<compile_context>
chip_gen: v7x
topology: tpu7x:2x2x1
jax: 0.10.0
libtpu: 0.0.40
codegen_flags: <defaults>
</compile_context>

<pallas_src>
import math
import functools

import jax
import jax.numpy as jnp
from jax import lax
from jax.experimental import pallas as pl
from jax.experimental.pallas import tpu as pltpu


# ------------------------------- helpers -----------------------------------

def _round_up(n, m):
    return ((n + m - 1) // m) * m


def _cdiv(a, b):
    return -(-a // b)


def _pick_row_tiling(n_rows, sublane):
    """Pick (row_tile, padded_rows).

    * row_tile is a multiple of `sublane` (16 for bf16-streamed x, 8 for f32).
    * Large inputs get big tiles (256 / 512): per-grid-step overhead is
      ~0.35 us and HBM-roofline fraction keeps rising up to ~512-wide blocks.
    * The grid-step count is kept even (when > 1) so the single 'parallel'
      grid axis splits evenly across v7x's two TensorCores.
    """
    n_r = _round_up(max(n_rows, 1), sublane)
    cap = 512 if n_r >= 2048 else 256
    if n_r <= cap:
        if n_r >= 4 * sublane:
            tm = _round_up(_cdiv(n_r, 2), sublane)   # ~2 steps, both TCs busy
        else:
            tm = n_r                                 # tiny input: single step
    else:
        steps = _cdiv(n_r, cap)
        if steps % 2:
            steps += 1                               # even steps for megacore
        tm = _round_up(_cdiv(n_r, steps), sublane)
    return tm, _round_up(n_r, tm)


# ------------------------------- kernel ------------------------------------

def _fused_mlp_kernel(x_ref, *refs, n_layers, operand_dtype):
    """refs = (w0, b0, w1, b1, ..., w_{L-1}, b_{L-1}, o_ref).

    One row tile of x (already in the MXU operand dtype); every padded weight
    and bias is fully VMEM-resident.  The layer loop is a static Python loop
    (unrolled at trace time); activations never leave VMEM/vregs.
    """
    o_ref = refs[-1]
    wb = refs[:-1]

    inv_sqrt2 = jnp.float32(1.0 / math.sqrt(2.0))
    h = x_ref[...]                                   # (tm, K0p) operand dtype

    for li in range(n_layers):
        w = wb[2 * li][...]                          # (Kp, Dp) operand dtype
        b = wb[2 * li + 1][...]                      # (1,  Dp) f32
        y = jnp.dot(h.astype(operand_dtype), w,
                    preferred_element_type=jnp.float32) + b
        # Exact GELU (torch.nn.GELU default): 0.5*y*(1 + erf(y/sqrt(2))).
        # TODO(synk): on v6e/v7x run this elementwise tail in bf16 (or use the
        # tanh-approx GELU on the EUP slot) -- with only-128-lane matmuls the
        # f32 erf polynomial is the binding VALU work, not the MXU.
        h = 0.5 * y * (1.0 + lax.erf(y * inv_sqrt2))

    o_ref[...] = h.astype(o_ref.dtype)


# ------------------------------- wrapper ------------------------------------

def fused_fc_block(x, params, *, operand_dtype=jnp.bfloat16,
                   single_buffer_weights=True):
    """y = GELU(... GELU(GELU(x@W0+b0)@W1+b1) ... @W_{L-1}+b_{L-1})

    All layers in one Pallas kernel, tiled over rows only; feature dims padded
    to multiples of 128 lanes (padding sliced off at the end).
    """
    N, K0 = x.shape
    n_layers = len(params)
    dims = [K0] + [w.shape[1] for (w, _) in params]
    dims_pad = [_round_up(d, 128) for d in dims]

    op_itemsize = jnp.dtype(operand_dtype).itemsize
    sublane = 32 // op_itemsize                      # 16 for bf16, 8 for f32
    tm, n_pad = _pick_row_tiling(N, sublane)

    # x streamed in the MXU operand dtype: halves the only per-step HBM read
    # and removes the per-tile up-cast.  Pad rows/cols with zeros.
    x_p = jnp.zeros((n_pad, dims_pad[0]), operand_dtype).at[:N, :K0].set(
        x.astype(operand_dtype))

    const_idx = lambda i: (0, 0)
    if single_buffer_weights:
        # Grid-invariant operands: default pipelining double-buffers them for
        # zero benefit; single-buffering halves the dominant VMEM footprint.
        const_spec = lambda shape: pl.BlockSpec(
            shape, const_idx, pipeline_mode=pl.Buffered(1))
    else:
        const_spec = lambda shape: pl.BlockSpec(shape, const_idx)

    inputs = [x_p]
    in_specs = [pl.BlockSpec((tm, dims_pad[0]), lambda i: (i, 0))]

    for li, (w, b) in enumerate(params):
        kp, dp = dims_pad[li], dims_pad[li + 1]
        k, d = w.shape
        # Weights cast to the MXU operand dtype ONCE here; bias kept f32 so
        # the in-kernel add/GELU path stays f32.
        w_p = jnp.zeros((kp, dp), operand_dtype).at[:k, :d].set(
            w.astype(operand_dtype))
        b_p = jnp.zeros((1, dp), jnp.float32).at[0, :d].set(
            b.astype(jnp.float32))
        inputs += [w_p, b_p]
        in_specs += [const_spec((kp, dp)), const_spec((1, dp))]
        # TODO(synk): if the resident padded weights approach ~half of v7x's
        # 64 MiB VMEM, tile the largest layer(s) over K/D with a trailing
        # 'arbitrary' grid axis + f32 accumulator scratch (or an inner
        # pltpu.emit_pipeline from HBM) instead of keeping [K, D] resident.

    out_spec = pl.BlockSpec((tm, dims_pad[-1]), lambda i: (i, 0))
    # TODO(synk): for a very narrow true out_dim (8 vs 128 padded lanes) a
    # masked (tm, out_dim) out block writes 16x fewer HBM bytes; benchmark the
    # masked-vst cost vs. this lane-dense padded write for large N.

    # Explicit scoped-VMEM budget: resident weights/biases (x buffer count)
    # + double-buffered x/out row tiles + f32 activation temps + headroom.
    w_bufs = 1 if single_buffer_weights else 2
    resident = sum(
        w_bufs * (dims_pad[li] * dims_pad[li + 1] * op_itemsize
                  + 8 * dims_pad[li + 1] * 4)
        for li in range(n_layers))
    streamed = 2 * tm * dims_pad[0] * op_itemsize + 2 * tm * dims_pad[-1] * 4
    temps = 4 * tm * max(dims_pad) * 4
    vmem_limit = int(1.25 * (resident + streamed + temps)) + (2 << 20)
    vmem_limit = max(min(vmem_limit, 64 << 20), 16 << 20)

    kernel = functools.partial(
        _fused_mlp_kernel, n_layers=n_layers, operand_dtype=operand_dtype)

    out_p = pl.pallas_call(
        kernel,
        out_shape=jax.ShapeDtypeStruct((n_pad, dims_pad[-1]), x.dtype),
        grid=(n_pad // tm,),
        in_specs=in_specs,
        out_specs=out_spec,
        compiler_params=pltpu.CompilerParams(
            dimension_semantics=("parallel",),
            vmem_limit_bytes=vmem_limit,
        ),
    )(*inputs)

    return out_p[:N, :dims[-1]]


_forward_single = jax.jit(
    functools.partial(fused_fc_block, single_buffer_weights=True))
_forward_double = jax.jit(
    functools.partial(fused_fc_block, single_buffer_weights=False))


def flowgnn_fc_block_forward(x, params):
    """Forward pass of FlowGNN_fc_block: (Linear + GELU) per layer, fused into
    a single Pallas kernel.  Prefers single-buffered resident weights; falls
    back to default double-buffered specs if pl.Buffered(1) is rejected."""
    try:
        return _forward_single(x, params)
    except Exception:
        # TODO(synk): remove once pl.Buffered(1) on grid-invariant BlockSpecs
        # is guaranteed by the deployed jax version.
        return _forward_double(x, params)


# ------------------------- params & reference --------------------------------

def init_fc_block_params(key, in_dim, hidden_layers, out_dim, dtype=jnp.float32):
    """Deterministic init mimicking nn.Linear defaults (uniform +/- 1/sqrt(fan_in)).
    Weights stored as [in, out] so the kernel computes x @ W directly
    (== PyTorch's x @ W.T with W [out, in])."""
    dims = [in_dim] + list(hidden_layers) + [out_dim]
    params = []
    for li in range(len(dims) - 1):
        fan_in, fan_out = dims[li], dims[li + 1]
        key, kw, kb = jax.random.split(key, 3)
        bound = 1.0 / math.sqrt(fan_in)
        w = jax.random.uniform(kw, (fan_in, fan_out), dtype, -bound, bound)
        b = jax.random.uniform(kb, (fan_out,), dtype, -bound, bound)
        params.append((w, b))
    return params


def _reference_forward(x, params, operand_dtype=None):
    """Pure-JAX reference.  operand_dtype=None -> full f32 math;
    operand_dtype=bf16 -> same matmul-operand casts as the kernel."""
    h = x.astype(jnp.float32)
    for w, b in params:
        if operand_dtype is None:
            y = h @ w + b
        else:
            y = jnp.dot(h.astype(operand_dtype), w.astype(operand_dtype),
                        preferred_element_type=jnp.float32) + b.astype(jnp.float32)
        h = 0.5 * y * (1.0 + lax.erf(y * jnp.float32(1.0 / math.sqrt(2.0))))
    return h


# ---------------------------------- main -------------------------------------

if __name__ == "__main__":
    # Small, module-consistent shapes.
    N = 64            # number of rows ("nodes")
    in_dim = 16       # LazyLinear infers this from the input
    hidden_layers = (32, 32)
    out_dim = 8

    key = jax.random.PRNGKey(0)
    key, kx = jax.random.split(key)
    x = jax.random.normal(kx, (N, in_dim), jnp.float32)

    params = tuple(init_fc_block_params(key, in_dim, hidden_layers, out_dim))

    out = flowgnn_fc_block_forward(x, params)
    out = jax.block_until_ready(out)

    assert out.shape == (N, out_dim), out.shape

    # Tight check against a reference with the same bf16 matmul operands.
    ref_bf16 = _reference_forward(x, params, operand_dtype=jnp.bfloat16)
    assert jnp.allclose(out, ref_bf16, atol=2e-3, rtol=2e-3), float(
        jnp.max(jnp.abs(out - ref_bf16)))

    # Loose check against the full-f32 (torch-equivalent) math.
    ref_f32 = _reference_forward(x, params)
    assert jnp.allclose(out, ref_f32, atol=5e-2, rtol=5e-2), float(
        jnp.max(jnp.abs(out - ref_f32)))

    print("KERNEL_OK")
</pallas_src>

<mosaic_0001>
module attributes {stable_mosaic.version = 11 : i64} {
  func.func @_fused_mlp_kernel(%arg0: i32, %arg1: memref<32x128xbf16, #tpu.memory_space<vmem>>, %arg2: memref<128x128xbf16, #tpu.memory_space<vmem>>, %arg3: memref<1x128xf32, #tpu.memory_space<vmem>>, %arg4: memref<128x128xbf16, #tpu.memory_space<vmem>>, %arg5: memref<1x128xf32, #tpu.memory_space<vmem>>, %arg6: memref<128x128xbf16, #tpu.memory_space<vmem>>, %arg7: memref<1x128xf32, #tpu.memory_space<vmem>>, %arg8: memref<32x128xf32, #tpu.memory_space<vmem>>) attributes {dimension_semantics = [#tpu.dimension_semantics<parallel>], iteration_bounds = array<i64: 2>, scalar_prefetch = 0 : i64, scratch_operands = 0 : i64, tpu.core_type = #tpu.core_type<tc>, window_params = [{transform_indices = @transform_0, window_bounds = array<i64: 32, 128>}, {pipeline_mode = #tpu.pipeline_mode<synchronous>, transform_indices = @transform_1, window_bounds = array<i64: 128, 128>}, {pipeline_mode = #tpu.pipeline_mode<synchronous>, transform_indices = @transform_2, window_bounds = array<i64: 1, 128>}, {pipeline_mode = #tpu.pipeline_mode<synchronous>, transform_indices = @transform_3, window_bounds = array<i64: 128, 128>}, {pipeline_mode = #tpu.pipeline_mode<synchronous>, transform_indices = @transform_4, window_bounds = array<i64: 1, 128>}, {pipeline_mode = #tpu.pipeline_mode<synchronous>, transform_indices = @transform_5, window_bounds = array<i64: 128, 128>}, {pipeline_mode = #tpu.pipeline_mode<synchronous>, transform_indices = @transform_6, window_bounds = array<i64: 1, 128>}, {transform_indices = @transform_7, window_bounds = array<i64: 32, 128>}]} {
    %c0 = arith.constant 0 : index
    %c0_0 = arith.constant 0 : index
    %0 = vector.load %arg1[%c0, %c0_0] : memref<32x128xbf16, #tpu.memory_space<vmem>>, vector<32x128xbf16>
    %c0_1 = arith.constant 0 : index
    %c0_2 = arith.constant 0 : index
    %1 = vector.load %arg2[%c0_1, %c0_2] : memref<128x128xbf16, #tpu.memory_space<vmem>>, vector<128x128xbf16>
    %c0_3 = arith.constant 0 : index
    %c0_4 = arith.constant 0 : index
    %2 = vector.load %arg3[%c0_3, %c0_4] : memref<1x128xf32, #tpu.memory_space<vmem>>, vector<1x128xf32>
    %cst = arith.constant dense<0.000000e+00> : vector<32x128xf32>
    %3 = tpu.matmul %0, %1, %cst {dimension_numbers = #tpu.dot_dimension_numbers<[1], [0], [0], [1], [0, 0, 1, 1], [], []>} : vector<32x128xbf16>, vector<128x128xbf16>, vector<32x128xf32> -> vector<32x128xf32>
    %4 = vector.broadcast %2 : vector<1x128xf32> to vector<32x128xf32>
    %5 = arith.addf %3, %4 : vector<32x128xf32>
    %cst_5 = arith.constant 5.000000e-01 : f32
    %6 = vector.broadcast %cst_5 : f32 to vector<32x128xf32>
    %7 = arith.mulf %6, %5 : vector<32x128xf32>
    %cst_6 = arith.constant 0.707106769 : f32
    %8 = vector.broadcast %cst_6 : f32 to vector<32x128xf32>
    %9 = arith.mulf %5, %8 : vector<32x128xf32>
    %10 = math.erf %9 : vector<32x128xf32>
    %cst_7 = arith.constant 1.000000e+00 : f32
    %11 = vector.broadcast %cst_7 : f32 to vector<32x128xf32>
    %12 = arith.addf %11, %10 : vector<32x128xf32>
    %13 = arith.mulf %7, %12 : vector<32x128xf32>
    %c0_8 = arith.constant 0 : index
    %c0_9 = arith.constant 0 : index
    %14 = vector.load %arg4[%c0_8, %c0_9] : memref<128x128xbf16, #tpu.memory_space<vmem>>, vector<128x128xbf16>
    %c0_10 = arith.constant 0 : index
    %c0_11 = arith.constant 0 : index
    %15 = vector.load %arg5[%c0_10, %c0_11] : memref<1x128xf32, #tpu.memory_space<vmem>>, vector<1x128xf32>
    %16 = arith.truncf %13 : vector<32x128xf32> to vector<32x128xbf16>
    %cst_12 = arith.constant dense<0.000000e+00> : vector<32x128xf32>
    %17 = tpu.matmul %16, %14, %cst_12 {dimension_numbers = #tpu.dot_dimension_numbers<[1], [0], [0], [1], [0, 0, 1, 1], [], []>} : vector<32x128xbf16>, vector<128x128xbf16>, vector<32x128xf32> -> vector<32x128xf32>
    %18 = vector.broadcast %15 : vector<1x128xf32> to vector<32x128xf32>
    %19 = arith.addf %17, %18 : vector<32x128xf32>
    %cst_13 = arith.constant 5.000000e-01 : f32
    %20 = vector.broadcast %cst_13 : f32 to vector<32x128xf32>
    %21 = arith.mulf %20, %19 : vector<32x128xf32>
    %cst_14 = arith.constant 0.707106769 : f32
    %22 = vector.broadcast %cst_14 : f32 to vector<32x128xf32>
    %23 = arith.mulf %19, %22 : vector<32x128xf32>
    %24 = math.erf %23 : vector<32x128xf32>
    %cst_15 = arith.constant 1.000000e+00 : f32
    %25 = vector.broadcast %cst_15 : f32 to vector<32x128xf32>
    %26 = arith.addf %25, %24 : vector<32x128xf32>
    %27 = arith.mulf %21, %26 : vector<32x128xf32>
    %c0_16 = arith.constant 0 : index
    %c0_17 = arith.constant 0 : index
    %28 = vector.load %arg6[%c0_16, %c0_17] : memref<128x128xbf16, #tpu.memory_space<vmem>>, vector<128x128xbf16>
    %c0_18 = arith.constant 0 : index
    %c0_19 = arith.constant 0 : index
    %29 = vector.load %arg7[%c0_18, %c0_19] : memref<1x128xf32, #tpu.memory_space<vmem>>, vector<1x128xf32>
    %30 = arith.truncf %27 : vector<32x128xf32> to vector<32x128xbf16>
    %cst_20 = arith.constant dense<0.000000e+00> : vector<32x128xf32>
    %31 = tpu.matmul %30, %28, %cst_20 {dimension_numbers = #tpu.dot_dimension_numbers<[1], [0], [0], [1], [0, 0, 1, 1], [], []>} : vector<32x128xbf16>, vector<128x128xbf16>, vector<32x128xf32> -> vector<32x128xf32>
    %32 = vector.broadcast %29 : vector<1x128xf32> to vector<32x128xf32>
    %33 = arith.addf %31, %32 : vector<32x128xf32>
    %cst_21 = arith.constant 5.000000e-01 : f32
    %34 = vector.broadcast %cst_21 : f32 to vector<32x128xf32>
    %35 = arith.mulf %34, %33 : vector<32x128xf32>
    %cst_22 = arith.constant 0.707106769 : f32
    %36 = vector.broadcast %cst_22 : f32 to vector<32x128xf32>
    %37 = arith.mulf %33, %36 : vector<32x128xf32>
    %38 = math.erf %37 : vector<32x128xf32>
    %cst_23 = arith.constant 1.000000e+00 : f32
    %39 = vector.broadcast %cst_23 : f32 to vector<32x128xf32>
    %40 = arith.addf %39, %38 : vector<32x128xf32>
    %41 = arith.mulf %35, %40 : vector<32x128xf32>
    %c0_24 = arith.constant 0 : index
    %c0_25 = arith.constant 0 : index
    %42 = vector.load %arg8[%c0_24, %c0_25] : memref<32x128xf32, #tpu.memory_space<vmem>>, vector<32x128xf32>
    tpu.vector_store %arg8[%c0_24, %c0_25], %41 {strides = array<i32>} : memref<32x128xf32, #tpu.memory_space<vmem>>, vector<32x128xf32>,
    return
  }
  func.func @transform_0(%arg0: i32) -> (i32, i32) {
    %c0_i32 = arith.constant 0 : i32
    %c0_i32_0 = arith.constant 0 : i32
    return %arg0, %c0_i32 : i32, i32
  }
  func.func @transform_1(%arg0: i32) -> (i32, i32) {
    %c0_i32 = arith.constant 0 : i32
    %c0_i32_0 = arith.constant 0 : i32
    %c0_i32_1 = arith.constant 0 : i32
    return %c0_i32, %c0_i32_0 : i32, i32
  }
  func.func @transform_2(%arg0: i32) -> (i32, i32) {
    %c0_i32 = arith.constant 0 : i32
    %c0_i32_0 = arith.constant 0 : i32
    %c0_i32_1 = arith.constant 0 : i32
    return %c0_i32, %c0_i32_0 : i32, i32
  }
  func.func @transform_3(%arg0: i32) -> (i32, i32) {
    %c0_i32 = arith.constant 0 : i32
    %c0_i32_0 = arith.constant 0 : i32
    %c0_i32_1 = arith.constant 0 : i32
    return %c0_i32, %c0_i32_0 : i32, i32
  }
  func.func @transform_4(%arg0: i32) -> (i32, i32) {
    %c0_i32 = arith.constant 0 : i32
    %c0_i32_0 = arith.constant 0 : i32
    %c0_i32_1 = arith.constant 0 : i32
    return %c0_i32, %c0_i32_0 : i32, i32
  }
  func.func @transform_5(%arg0: i32) -> (i32, i32) {
    %c0_i32 = arith.constant 0 : i32
    %c0_i32_0 = arith.constant 0 : i32
    %c0_i32_1 = arith.constant 0 : i32
    return %c0_i32, %c0_i32_0 : i32, i32
  }
  func.func @transform_6(%arg0: i32) -> (i32, i32) {
    %c0_i32 = arith.constant 0 : i32
    %c0_i32_0 = arith.constant 0 : i32
    %c0_i32_1 = arith.constant 0 : i32
    return %c0_i32, %c0_i32_0 : i32, i32
  }
  func.func @transform_7(%arg0: i32) -> (i32, i32) {
    %c0_i32 = arith.constant 0 : i32
    %c0_i32_0 = arith.constant 0 : i32
    return %arg0, %c0_i32 : i32, i32
  }
}

module attributes {stable_mosaic.version = 11 : i64} {
  func.func @_fused_mlp_kernel(%arg0: i32, %arg1: memref<32x128xbf16, #tpu.memory_space<vmem>>, %arg2: memref<128x128xbf16, #tpu.memory_space<vmem>>, %arg3: memref<1x128xf32, #tpu.memory_space<vmem>>, %arg4: memref<128x128xbf16, #tpu.memory_space<vmem>>, %arg5: memref<1x128xf32, #tpu.memory_space<vmem>>, %arg6: memref<128x128xbf16, #tpu.memory_space<vmem>>, %arg7: memref<1x128xf32, #tpu.memory_space<vmem>>, %arg8: memref<32x128xf32, #tpu.memory_space<vmem>>) attributes {dimension_semantics = [#tpu.dimension_semantics<parallel>], iteration_bounds = array<i64: 2>, scalar_prefetch = 0 : i64, scratch_operands = 0 : i64, tpu.core_type = #tpu.core_type<tc>, window_params = [{transform_indices = @transform_0, window_bounds = array<i64: 32, 128>}, {pipeline_mode = #tpu.pipeline_mode<synchronous>, transform_indices = @transform_1, window_bounds = array<i64: 128, 128>}, {pipeline_mode = #tpu.pipeline_mode<synchronous>, transform_indices = @transform_2, window_bounds = array<i64: 1, 128>}, {pipeline_mode = #tpu.pipeline_mode<synchronous>, transform_indices = @transform_3, window_bounds = array<i64: 128, 128>}, {pipeline_mode = #tpu.pipeline_mode<synchronous>, transform_indices = @transform_4, window_bounds = array<i64: 1, 128>}, {pipeline_mode = #tpu.pipeline_mode<synchronous>, transform_indices = @transform_5, window_bounds = array<i64: 128, 128>}, {pipeline_mode = #tpu.pipeline_mode<synchronous>, transform_indices = @transform_6, window_bounds = array<i64: 1, 128>}, {transform_indices = @transform_7, window_bounds = array<i64: 32, 128>}]} {
    %c0 = arith.constant 0 : index
    %c0_0 = arith.constant 0 : index
    %0 = vector.load %arg1[%c0, %c0_0] : memref<32x128xbf16, #tpu.memory_space<vmem>>, vector<32x128xbf16>
    %c0_1 = arith.constant 0 : index
    %c0_2 = arith.constant 0 : index
    %1 = vector.load %arg2[%c0_1, %c0_2] : memref<128x128xbf16, #tpu.memory_space<vmem>>, vector<128x128xbf16>
    %c0_3 = arith.constant 0 : index
    %c0_4 = arith.constant 0 : index
    %2 = vector.load %arg3[%c0_3, %c0_4] : memref<1x128xf32, #tpu.memory_space<vmem>>, vector<1x128xf32>
    %cst = arith.constant dense<0.000000e+00> : vector<32x128xf32>
    %3 = tpu.matmul %0, %1, %cst {dimension_numbers = #tpu.dot_dimension_numbers<[1], [0], [0], [1], [0, 0, 1, 1], [], []>} : vector<32x128xbf16>, vector<128x128xbf16>, vector<32x128xf32> -> vector<32x128xf32>
    %4 = vector.broadcast %2 : vector<1x128xf32> to vector<32x128xf32>
    %5 = arith.addf %3, %4 : vector<32x128xf32>
    %cst_5 = arith.constant 5.000000e-01 : f32
    %6 = vector.broadcast %cst_5 : f32 to vector<32x128xf32>
    %7 = arith.mulf %6, %5 : vector<32x128xf32>
    %cst_6 = arith.constant 0.707106769 : f32
    %8 = vector.broadcast %cst_6 : f32 to vector<32x128xf32>
    %9 = arith.mulf %5, %8 : vector<32x128xf32>
    %10 = math.erf %9 : vector<32x128xf32>
    %cst_7 = arith.constant 1.000000e+00 : f32
    %11 = vector.broadcast %cst_7 : f32 to vector<32x128xf32>
    %12 = arith.addf %11, %10 : vector<32x128xf32>
    %13 = arith.mulf %7, %12 : vector<32x128xf32>
    %c0_8 = arith.constant 0 : index
    %c0_9 = arith.constant 0 : index
    %14 = vector.load %arg4[%c0_8, %c0_9] : memref<128x128xbf16, #tpu.memory_space<vmem>>, vector<128x128xbf16>
    %c0_10 = arith.constant 0 : index
    %c0_11 = arith.constant 0 : index
    %15 = vector.load %arg5[%c0_10, %c0_11] : memref<1x128xf32, #tpu.memory_space<vmem>>, vector<1x128xf32>
    %16 = arith.truncf %13 : vector<32x128xf32> to vector<32x128xbf16>
    %cst_12 = arith.constant dense<0.000000e+00> : vector<32x128xf32>
    %17 = tpu.matmul %16, %14, %cst_12 {dimension_numbers = #tpu.dot_dimension_numbers<[1], [0], [0], [1], [0, 0, 1, 1], [], []>} : vector<32x128xbf16>, vector<128x128xbf16>, vector<32x128xf32> -> vector<32x128xf32>
    %18 = vector.broadcast %15 : vector<1x128xf32> to vector<32x128xf32>
    %19 = arith.addf %17, %18 : vector<32x128xf32>
    %cst_13 = arith.constant 5.000000e-01 : f32
    %20 = vector.broadcast %cst_13 : f32 to vector<32x128xf32>
    %21 = arith.mulf %20, %19 : vector<32x128xf32>
    %cst_14 = arith.constant 0.707106769 : f32
    %22 = vector.broadcast %cst_14 : f32 to vector<32x128xf32>
    %23 = arith.mulf %19, %22 : vector<32x128xf32>
    %24 = math.erf %23 : vector<32x128xf32>
    %cst_15 = arith.constant 1.000000e+00 : f32
    %25 = vector.broadcast %cst_15 : f32 to vector<32x128xf32>
    %26 = arith.addf %25, %24 : vector<32x128xf32>
    %27 = arith.mulf %21, %26 : vector<32x128xf32>
    %c0_16 = arith.constant 0 : index
    %c0_17 = arith.constant 0 : index
    %28 = vector.load %arg6[%c0_16, %c0_17] : memref<128x128xbf16, #tpu.memory_space<vmem>>, vector<128x128xbf16>
    %c0_18 = arith.constant 0 : index
    %c0_19 = arith.constant 0 : index
    %29 = vector.load %arg7[%c0_18, %c0_19] : memref<1x128xf32, #tpu.memory_space<vmem>>, vector<1x128xf32>
    %30 = arith.truncf %27 : vector<32x128xf32> to vector<32x128xbf16>
    %cst_20 = arith.constant dense<0.000000e+00> : vector<32x128xf32>
    %31 = tpu.matmul %30, %28, %cst_20 {dimension_numbers = #tpu.dot_dimension_numbers<[1], [0], [0], [1], [0, 0, 1, 1], [], []>} : vector<32x128xbf16>, vector<128x128xbf16>, vector<32x128xf32> -> vector<32x128xf32>
    %32 = vector.broadcast %29 : vector<1x128xf32> to vector<32x128xf32>
    %33 = arith.addf %31, %32 : vector<32x128xf32>
    %cst_21 = arith.constant 5.000000e-01 : f32
    %34 = vector.broadcast %cst_21 : f32 to vector<32x128xf32>
    %35 = arith.mulf %34, %33 : vector<32x128xf32>
    %cst_22 = arith.constant 0.707106769 : f32
    %36 = vector.broadcast %cst_22 : f32 to vector<32x128xf32>
    %37 = arith.mulf %33, %36 : vector<32x128xf32>
    %38 = math.erf %37 : vector<32x128xf32>
    %cst_23 = arith.constant 1.000000e+00 : f32
    %39 = vector.broadcast %cst_23 : f32 to vector<32x128xf32>
    %40 = arith.addf %39, %38 : vector<32x128xf32>
    %41 = arith.mulf %35, %40 : vector<32x128xf32>
    %c0_24 = arith.constant 0 : index
    %c0_25 = arith.constant 0 : index
    %42 = vector.load %arg8[%c0_24, %c0_25] : memref<32x128xf32, #tpu.memory_space<vmem>>, vector<32x128xf32>
    tpu.vector_store %arg8[%c0_24, %c0_25], %41 {strides = array<i32>} : memref<32x128xf32, #tpu.memory_space<vmem>>, vector<32x128xf32>,
    return
  }
  func.func @transform_0(%arg0: i32) -> (i32, i32) {
    %c0_i32 = arith.constant 0 : i32
    %c0_i32_0 = arith.constant 0 : i32
    return %arg0, %c0_i32 : i32, i32
  }
  func.func @transform_1(%arg0: i32) -> (i32, i32) {
    %c0_i32 = arith.constant 0 : i32
    %c0_i32_0 = arith.constant 0 : i32
    %c0_i32_1 = arith.constant 0 : i32
    return %c0_i32, %c0_i32_0 : i32, i32
  }
  func.func @transform_2(%arg0: i32) -> (i32, i32) {
    %c0_i32 = arith.constant 0 : i32
    %c0_i32_0 = arith.constant 0 : i32
    %c0_i32_1 = arith.constant 0 : i32
    return %c0_i32, %c0_i32_0 : i32, i32
  }
  func.func @transform_3(%arg0: i32) -> (i32, i32) {
    %c0_i32 = arith.constant 0 : i32
    %c0_i32_0 = arith.constant 0 : i32
    %c0_i32_1 = arith.constant 0 : i32
    return %c0_i32, %c0_i32_0 : i32, i32
  }
  func.func @transform_4(%arg0: i32) -> (i32, i32) {
    %c0_i32 = arith.constant 0 : i32
    %c0_i32_0 = arith.constant 0 : i32
    %c0_i32_1 = arith.constant 0 : i32
    return %c0_i32, %c0_i32_0 : i32, i32
  }
  func.func @transform_5(%arg0: i32) -> (i32, i32) {
    %c0_i32 = arith.constant 0 : i32
    %c0_i32_0 = arith.constant 0 : i32
    %c0_i32_1 = arith.constant 0 : i32
    return %c0_i32, %c0_i32_0 : i32, i32
  }
  func.func @transform_6(%arg0: i32) -> (i32, i32) {
    %c0_i32 = arith.constant 0 : i32
    %c0_i32_0 = arith.constant 0 : i32
    %c0_i32_1 = arith.constant 0 : i32
    return %c0_i32, %c0_i32_0 : i32, i32
  }
  func.func @transform_7(%arg0: i32) -> (i32, i32) {
    %c0_i32 = arith.constant 0 : i32
    %c0_i32_0 = arith.constant 0 : i32
    return %arg0, %c0_i32 : i32, i32
  }
}

</mosaic_0001>

<llo_original>
// kernel: fused_fc_block.1
$region0: #{fused_fc_block.1}
  #allocation0 [shape = 'u32[]', space=smem, size = 0x4, offset = 0x4, fixed_abs, tag = 'smem constant byte address 0x4 - core index']
  #allocation1 [shape = 'u32[144,128]{1,0:T(1,128)}', space=vmem, size = 0x12000, scoped, tag = 'internal scratch']
  %s0 = inlined_call_operand.vmem [shape: bf16[64,128], index: 0, kind: input, shape index: {}]
  %s1 = inlined_call_operand.vmem [shape: bf16[128,128], index: 1, kind: input, shape index: {}]
  %s2 = inlined_call_operand.vmem [shape: f32[1,128], index: 2, kind: input, shape index: {}]
  %s3 = inlined_call_operand.vmem [shape: bf16[128,128], index: 3, kind: input, shape index: {}]
  %s4 = inlined_call_operand.vmem [shape: f32[1,128], index: 4, kind: input, shape index: {}]
  %s5 = inlined_call_operand.vmem [shape: bf16[128,128], index: 5, kind: input, shape index: {}]
  %s6 = inlined_call_operand.vmem [shape: f32[1,128], index: 6, kind: input, shape index: {}]
  %s7 = inlined_call_operand.vmem [shape: f32[64,128], index: 7, kind: output, shape index: {}]
  %s8 = sld [smem:[#allocation0]]
  $region61: #{fused_fc_block.1} parent=0
    _
  %s10 = ssub.s32 1, %s8
  %s11 = scalar_select 0, %s10, %s8
  loop: start=0, step=1, limit=4
  $region2: #{fused_fc_block.1} parent=0 // loop_pre_header
    _
  $region3: #{fused_fc_block.1} parent=0 // loop_header
    %s13 = sphi 0, %s17
    %p14 = scmp.ge.s32.totalorder %s13, 4
    %s23 = sphi 0, %s25
    %s26 = sphi 0, %s23
    %s27 = sphi 0, %s26
    %s43 = sphi 0, %s27
    %s47 = sphi 0, %s47
    %s49 = sphi 0, %s47
    %s50 = sphi 0, %s49
    %s64 = sphi 0, %s50
    %s68 = sphi 0, %s68
    %s70 = sphi 0, %s68
    %s71 = sphi 0, %s70
    %s85 = sphi 0, %s71
    %s89 = sphi 0, %s89
    %s91 = sphi 0, %s89
    %s92 = sphi 0, %s91
    %s106 = sphi 0, %s92
    %s110 = sphi 0, %s110
    %s112 = sphi 0, %s110
    %s113 = sphi 0, %s112
    %s127 = sphi 0, %s113
    %s131 = sphi 0, %s131
    %s133 = sphi 0, %s131
    %s134 = sphi 0, %s133
    %s148 = sphi 0, %s134
    %s152 = sphi 0, %s152
    %s154 = sphi 0, %s152
    %s155 = sphi 0, %s154
    %s169 = sphi 0, %s155
    %s175 = sphi 0, %s177
    %s178 = sphi 0, %s175
    %s179 = sphi 0, %s178
    %s195 = sphi 0, %s179
  $region4: #{fused_fc_block.1} parent=0 // loop_header_branch
    %16 = sbr.rel (%p14) target = $region8
  $region5: #{fused_fc_block.1} parent=0 // loop_body
    %s18 = ssub.s32 %s13, 1
    %s19 = ssub.s32 %s13, 2
    %s20 = sadd.s32 %s13, 1
    %s21 = ssub.s32 %s13, %s20
    %p22 = scmp.eq.s32.totalorder %s21, 0
    %s24 = sadd.s32 %s23, 1
    %s25 = scalar_select %p22, %s23, %s24
    %p28 = pneg %p22
    %p29 = scmp.eq.s32.totalorder %s13, 1
    %p30 = por %p28, %p29
    %p31 = scmp.ne.s32.totalorder %s23, %s26
    %p32 = scmp.eq.s32.totalorder %s13, 0
    %p33 = por %p31, %p32
    %p34 = scmp.ne.s32.totalorder %s23, %s26
    %p35 = scmp.eq.s32.totalorder %s18, 1
    %p36 = por %p34, %p35
    %p37 = scmp.ne.s32.totalorder %s26, %s27
    %p38 = scmp.eq.s32.totalorder %s18, 0
    %p39 = por %p37, %p38
    %p40 = scmp.ne.s32.totalorder %s26, %s27
    %p41 = scmp.eq.s32.totalorder %s19, 1
    %p42 = por %p40, %p41
    %p44 = scmp.ne.s32.totalorder %s27, %s43
    %p45 = scmp.eq.s32.totalorder %s19, 0
    %p46 = por %p44, %p45
    %s48 = sadd.s32 %s47, 1
    %p51 = scmp.eq.s32.totalorder %s13, 1
    %p52 = scmp.ne.s32.totalorder %s47, %s49
    %p53 = scmp.eq.s32.totalorder %s13, 0
    %p54 = por %p52, %p53
    %p55 = scmp.ne.s32.totalorder %s47, %s49
    %p56 = scmp.eq.s32.totalorder %s18, 1
    %p57 = por %p55, %p56
    %p58 = scmp.ne.s32.totalorder %s49, %s50
    %p59 = scmp.eq.s32.totalorder %s18, 0
    %p60 = por %p58, %p59
    %p61 = scmp.ne.s32.totalorder %s49, %s50
    %p62 = scmp.eq.s32.totalorder %s19, 1
    %p63 = por %p61, %p62
    %p65 = scmp.ne.s32.totalorder %s50, %s64
    %p66 = scmp.eq.s32.totalorder %s19, 0
    %p67 = por %p65, %p66
    %s69 = sadd.s32 %s68, 1
    %p72 = scmp.eq.s32.totalorder %s13, 1
    %p73 = scmp.ne.s32.totalorder %s68, %s70
    %p74 = scmp.eq.s32.totalorder %s13, 0
    %p75 = por %p73, %p74
    %p76 = scmp.ne.s32.totalorder %s68, %s70
    %p77 = scmp.eq.s32.totalorder %s18, 1
    %p78 = por %p76, %p77
    %p79 = scmp.ne.s32.totalorder %s70, %s71
    %p80 = scmp.eq.s32.totalorder %s18, 0
    %p81 = por %p79, %p80
    %p82 = scmp.ne.s32.totalorder %s70, %s71
    %p83 = scmp.eq.s32.totalorder %s19, 1
    %p84 = por %p82, %p83
    %p86 = scmp.ne.s32.totalorder %s71, %s85
    %p87 = scmp.eq.s32.totalorder %s19, 0
    %p88 = por %p86, %p87
    %s90 = sadd.s32 %s89, 1
    %p93 = scmp.eq.s32.totalorder %s13, 1
    %p94 = scmp.ne.s32.totalorder %s89, %s91
    %p95 = scmp.eq.s32.totalorder %s13, 0
    %p96 = por %p94, %p95
    %p97 = scmp.ne.s32.totalorder %s89, %s91
    %p98 = scmp.eq.s32.totalorder %s18, 1
    %p99 = por %p97, %p98
    %p100 = scmp.ne.s32.totalorder %s91, %s92
    %p101 = scmp.eq.s32.totalorder %s18, 0
    %p102 = por %p100, %p101
    %p103 = scmp.ne.s32.totalorder %s91, %s92
    %p104 = scmp.eq.s32.totalorder %s19, 1
    %p105 = por %p103, %p104
    %p107 = scmp.ne.s32.totalorder %s92, %s106
    %p108 = scmp.eq.s32.totalorder %s19, 0
    %p109 = por %p107, %p108
    %s111 = sadd.s32 %s110, 1
    %p114 = scmp.eq.s32.totalorder %s13, 1
    %p115 = scmp.ne.s32.totalorder %s110, %s112
    %p116 = scmp.eq.s32.totalorder %s13, 0
    %p117 = por %p115, %p116
    %p118 = scmp.ne.s32.totalorder %s110, %s112
    %p119 = scmp.eq.s32.totalorder %s18, 1
    %p120 = por %p118, %p119
    %p121 = scmp.ne.s32.totalorder %s112, %s113
    %p122 = scmp.eq.s32.totalorder %s18, 0
    %p123 = por %p121, %p122
    %p124 = scmp.ne.s32.totalorder %s112, %s113
    %p125 = scmp.eq.s32.totalorder %s19, 1
    %p126 = por %p124, %p125
    %p128 = scmp.ne.s32.totalorder %s113, %s127
    %p129 = scmp.eq.s32.totalorder %s19, 0
    %p130 = por %p128, %p129
    %s132 = sadd.s32 %s131, 1
    %p135 = scmp.eq.s32.totalorder %s13, 1
    %p136 = scmp.ne.s32.totalorder %s131, %s133
    %p137 = scmp.eq.s32.totalorder %s13, 0
    %p138 = por %p136, %p137
    %p139 = scmp.ne.s32.totalorder %s131, %s133
    %p140 = scmp.eq.s32.totalorder %s18, 1
    %p141 = por %p139, %p140
    %p142 = scmp.ne.s32.totalorder %s133, %s134
    %p143 = scmp.eq.s32.totalorder %s18, 0
    %p144 = por %p142, %p143
    %p145 = scmp.ne.s32.totalorder %s133, %s134
    %p146 = scmp.eq.s32.totalorder %s19, 1
    %p147 = por %p145, %p146
    %p149 = scmp.ne.s32.totalorder %s134, %s148
    %p150 = scmp.eq.s32.totalorder %s19, 0
    %p151 = por %p149, %p150
    %s153 = sadd.s32 %s152, 1
    %p156 = scmp.eq.s32.totalorder %s13, 1
    %p157 = scmp.ne.s32.totalorder %s152, %s154
    %p158 = scmp.eq.s32.totalorder %s13, 0
    %p159 = por %p157, %p158
    %p160 = scmp.ne.s32.totalorder %s152, %s154
    %p161 = scmp.eq.s32.totalorder %s18, 1
    %p162 = por %p160, %p161
    %p163 = scmp.ne.s32.totalorder %s154, %s155
    %p164 = scmp.eq.s32.totalorder %s18, 0
    %p165 = por %p163, %p164
    %p166 = scmp.ne.s32.totalorder %s154, %s155
    %p167 = scmp.eq.s32.totalorder %s19, 1
    %p168 = por %p166, %p167
    %p170 = scmp.ne.s32.totalorder %s155, %s169
    %p171 = scmp.eq.s32.totalorder %s19, 0
    %p172 = por %p170, %p171
    %s173 = ssub.s32 %s13, %s20
    %p174 = scmp.eq.s32.totalorder %s173, 0
    %s176 = sadd.s32 %s175, 1
    %s177 = scalar_select %p174, %s175, %s176
    %p180 = pneg %p174
    %p181 = scmp.eq.s32.totalorder %s13, 1
    %p182 = por %p180, %p181
    %p183 = scmp.ne.s32.totalorder %s175, %s178
    %p184 = scmp.eq.s32.totalorder %s13, 0
    %p185 = por %p183, %p184
    %p186 = scmp.ne.s32.totalorder %s175, %s178
    %p187 = scmp.eq.s32.totalorder %s18, 1
    %p188 = por %p186, %p187
    %p189 = scmp.ne.s32.totalorder %s178, %s179
    %p190 = scmp.eq.s32.totalorder %s18, 0
    %p191 = por %p189, %p190
    %p192 = scmp.ne.s32.totalorder %s178, %s179
    %p193 = scmp.eq.s32.totalorder %s19, 1
    %p194 = por %p192, %p193
    %p196 = scmp.ne.s32.totalorder %s179, %s195
    %p197 = scmp.eq.s32.totalorder %s19, 0
    %p198 = por %p196, %p197
    %p199 = scmp.le.s32.totalorder 1, %s13
    %p200 = scmp.lt.s32.totalorder %s13, 3
    %p201 = pnand %p199, %p200
    %p202 = pneg %p201
    // Predicated region
    $region9: #{fused_fc_block.1} parent=5 // pred_check
      _
    $region10: #{fused_fc_block.1} parent=5 // pred_check_branch
      %204 = sbr.rel (%p201) target = $region12
    $region11: #{fused_fc_block.1} parent=5 // pred_region
      %s205 = ssub.s32 %s13, 1
      // Predicated region
      $region13: #{fused_fc_block.1} parent=11 // pred_check
        %p206 = pneg %p60
      $region14: #{fused_fc_block.1} parent=11 // pred_check_branch
        %208 = sbr.rel (%p206) target = $region16
      $region15: #{fused_fc_block.1} parent=11 // pred_region
        _
      $region16: #{fused_fc_block.1} parent=11 // pred_fallthru
        _
      // Predicated region
      $region17: #{fused_fc_block.1} parent=11 // pred_check
        %p209 = pneg %p81
      $region18: #{fused_fc_block.1} parent=11 // pred_check_branch
        %211 = sbr.rel (%p209) target = $region20
      $region19: #{fused_fc_block.1} parent=11 // pred_region
        _
      $region20: #{fused_fc_block.1} parent=11 // pred_fallthru
        _
      // Predicated region
      $region21: #{fused_fc_block.1} parent=11 // pred_check
        %p212 = pneg %p102
      $region22: #{fused_fc_block.1} parent=11 // pred_check_branch
        %214 = sbr.rel (%p212) target = $region24
      $region23: #{fused_fc_block.1} parent=11 // pred_region
        _
      $region24: #{fused_fc_block.1} parent=11 // pred_fallthru
        _
      // Predicated region
      $region25: #{fused_fc_block.1} parent=11 // pred_check
        %p215 = pneg %p123
      $region26: #{fused_fc_block.1} parent=11 // pred_check_branch
        %217 = sbr.rel (%p215) target = $region28
      $region27: #{fused_fc_block.1} parent=11 // pred_region
        _
      $region28: #{fused_fc_block.1} parent=11 // pred_fallthru
        _
      // Predicated region
      $region29: #{fused_fc_block.1} parent=11 // pred_check
        %p218 = pneg %p144
      $region30: #{fused_fc_block.1} parent=11 // pred_check_branch
        %220 = sbr.rel (%p218) target = $region32
      $region31: #{fused_fc_block.1} parent=11 // pred_region
        _
      $region32: #{fused_fc_block.1} parent=11 // pred_fallthru
        _
      // Predicated region
      $region33: #{fused_fc_block.1} parent=11 // pred_check
        %p221 = pneg %p165
      $region34: #{fused_fc_block.1} parent=11 // pred_check_branch
        %223 = sbr.rel (%p221) target = $region36
      $region35: #{fused_fc_block.1} parent=11 // pred_region
        _
      $region36: #{fused_fc_block.1} parent=11 // pred_fallthru
        _
    $region12: #{fused_fc_block.1} parent=5 // pred_fallthru
      _
    %p224 = scmp.lt.s32.totalorder %s13, 2
    // Predicated region
    $region37: #{fused_fc_block.1} parent=5 // pred_check
      %p225 = pneg %p224
    $region38: #{fused_fc_block.1} parent=5 // pred_check_branch
      %227 = sbr.rel (%p225) target = $region40
    $region39: #{fused_fc_block.1} parent=5 // pred_region
      // Predicated region
      $region41: #{fused_fc_block.1} parent=39 // pred_check
        %p228 = pneg %p33
      $region42: #{fused_fc_block.1} parent=39 // pred_check_branch
        %230 = sbr.rel (%p228) target = $region44
      $region43: #{fused_fc_block.1} parent=39 // pred_region
        %s231 = smul.u32 4, %s13
        %p232 = scmp.lt.s32.totalorder %s231, 7
        %s233 = scalar_select %p232, %s231, 7
        %s234 = smul.addr %s233, 4
        %s235 = scalar_lea.vmem %s0, %s234
        %s236 = smul.u32 4, %s13
      $region44: #{fused_fc_block.1} parent=39 // pred_fallthru
        _
    $region40: #{fused_fc_block.1} parent=5 // pred_fallthru
      _
    %p237 = scmp.le.s32.totalorder 1, %s13
    %p238 = scmp.lt.s32.totalorder %s13, 3
    %p239 = pnand %p237, %p238
    %p240 = pneg %p239
    // Predicated region
    $region45: #{fused_fc_block.1} parent=5 // pred_check
      _
    $region46: #{fused_fc_block.1} parent=5 // pred_check_branch
      %242 = sbr.rel (%p239) target = $region48
    $region47: #{fused_fc_block.1} parent=5 // pred_region
      %s243 = ssub.s32 %s13, 1
      %s244 = smul.u32 4, %s18
      %p245 = scmp.lt.s32.totalorder %s244, 7
      %s246 = scalar_select %p245, %s244, 7
      %s247 = smul.addr %s246, 4
      %s248 = scalar_lea.vmem %s0, %s247
      %p249 = pneg %p39
      %p250 = pneg %p36
      %p251 = pneg %p60
      %p252 = pneg %p57
      %p253 = pneg %p81
      %p254 = pneg %p78
      %p255 = pneg %p102
      %p256 = pneg %p99
      %p257 = pneg %p123
      %p258 = pneg %p120
      %p259 = pneg %p144
      %p260 = pneg %p141
      %p261 = pneg %p165
      %p262 = pneg %p162
      %p263 = pneg %p191
      %p264 = pneg %p188
      %s265 = smul.u32 4, %s18
      %p266 = scmp.lt.s32.totalorder %s265, 7
      %s267 = scalar_select %p266, %s265, 7
      %s268 = smul.addr %s267, 8
      %s269 = scalar_lea.vmem %s7, %s268
      %s270 = smul.u32 4, %s18
      %p271 = scmp.lt.s32.totalorder %s270, 7
      %s272 = scalar_select %p271, %s270, 7
      %s273 = smul.addr %s272, 4
      %s274 = scalar_lea.vmem %s0, %s273
      %s275 = smul.u32 4, %s18
      %s276 = smul.u32 4, %s18
      %p277 = scmp.lt.s32.totalorder %s276, 7
      %s278 = scalar_select %p277, %s276, 7
      %s279 = smul.addr %s278, 8
      %s280 = scalar_lea.vmem %s7, %s279
      %s281 = smul.u32 4, %s18
      %v283 = vld [vmem:[%s274] sm:$0xf]
      %v284 = vld [vmem:[%s274 + $0x4] sm:$0xf]
      %v285 = vld [vmem:[%s274 + $0x8] sm:$0xf]
      %v286 = vld [vmem:[%s274 + $0xc] sm:$0xf]
      %v287 = vld [vmem:[%s1] sm:$0xf]
      %v288 = vld [vmem:[%s1 + $0x4] sm:$0xf]
      %v289 = vld [vmem:[%s1 + $0x8] sm:$0xf]
      %v290 = vld [vmem:[%s1 + $0xc] sm:$0xf]
      %v291 = vld [vmem:[%s1 + $0x10] sm:$0xf]
      %v292 = vld [vmem:[%s1 + $0x14] sm:$0xf]
      %v293 = vld [vmem:[%s1 + $0x18] sm:$0xf]
      %v294 = vld [vmem:[%s1 + $0x1c] sm:$0xf]
      %v295 = vld [vmem:[%s1 + $0x20] sm:$0xf]
      %v296 = vld [vmem:[%s1 + $0x24] sm:$0xf]
      %v297 = vld [vmem:[%s1 + $0x28] sm:$0xf]
      %v298 = vld [vmem:[%s1 + $0x2c] sm:$0xf]
      %v299 = vld [vmem:[%s1 + $0x30] sm:$0xf]
      %v300 = vld [vmem:[%s1 + $0x34] sm:$0xf]
      %v301 = vld [vmem:[%s1 + $0x38] sm:$0xf]
      %v302 = vld [vmem:[%s1 + $0x3c] sm:$0xf]
      %v303 = vld [vmem:[%s2] sm:$0x1]
      %v305 = vlaneseq
      %v306 = vshrl.u32 %v305, 7
      %v307 = vsub.s32 0, %v306
      %v308 = vrot.slane %v303, %v307
      %v314 = vunpack.c.l.b16 %v283
      %v315 = vunpack.c.l.b16 %v284
      %v316 = vunpack.c.l.b16 %v285
      %v317 = vunpack.c.l.b16 %v286
      %v318 = vpack.c.b16 %v315, %v314
      %v319 = vpack.c.b16 %v317, %v316
      %v338 = vunpack.c.l.b16 %v287
      %v339 = vunpack.c.l.b16 %v288
      %v340 = vunpack.c.l.b16 %v289
      %v341 = vunpack.c.l.b16 %v290
      %v342 = vunpack.c.l.b16 %v291
      %v343 = vunpack.c.l.b16 %v292
      %v344 = vunpack.c.l.b16 %v293
      %v345 = vunpack.c.l.b16 %v294
      %v346 = vunpack.c.l.b16 %v295
      %v347 = vunpack.c.l.b16 %v296
      %v348 = vunpack.c.l.b16 %v297
      %v349 = vunpack.c.l.b16 %v298
      %v350 = vunpack.c.l.b16 %v299
      %v351 = vunpack.c.l.b16 %v300
      %v352 = vunpack.c.l.b16 %v301
      %v353 = vunpack.c.l.b16 %v302
      %v354 = vpack.c.b16 %v339, %v338
      %v355 = vpack.c.b16 %v341, %v340
      %v356 = vpack.c.b16 %v343, %v342
      %v357 = vpack.c.b16 %v345, %v344
      %v358 = vpack.c.b16 %v347, %v346
      %v359 = vpack.c.b16 %v349, %v348
      %v360 = vpack.c.b16 %v351, %v350
      %v361 = vpack.c.b16 %v353, %v352
      %370 = vmatprep.subr.bf16.mxu0 0
      %371 = vmatpush1.bf16.msra.mxu0 %v354
      %372 = vmatprep.subr.bf16.mxu0 0
      %373 = vmatpush1.bf16.msra.mxu0 %v355
      %374 = vmatprep.subr.bf16.mxu0 0
      %375 = vmatpush1.bf16.msra.mxu0 %v356
      %376 = vmatprep.subr.bf16.mxu0 0
      %377 = vmatpush1.bf16.msra.mxu0 %v357
      %378 = vmatprep.subr.bf16.mxu0 0
      %379 = vmatpush1.bf16.msra.mxu0 %v358
      %380 = vmatprep.subr.bf16.mxu0 0
      %381 = vmatpush1.bf16.msra.mxu0 %v359
      %382 = vmatprep.subr.bf16.mxu0 0
      %383 = vmatpush1.bf16.msra.mxu0 %v360
      %384 = vmatprep.subr.bf16.mxu0 0
      %385 = vmatpush1.bf16.msra.mxu0 %v361
      %386 = vmatprep.subr.bf16.mxu0 0
      %387 = vmatpush1.bf16.msra.mxu0 0
      %388 = vmatprep.subr.bf16.mxu0 0
      %389 = vmatpush1.bf16.msra.mxu0 0
      %390 = vmatprep.subr.bf16.mxu0 0
      %391 = vmatpush1.bf16.msra.mxu0 0
      %392 = vmatprep.subr.bf16.mxu0 0
      %393 = vmatpush1.bf16.msra.mxu0 0
      %394 = vmatprep.subr.bf16.mxu0 0
      %395 = vmatpush1.bf16.msra.mxu0 0
      %396 = vmatprep.subr.bf16.mxu0 0
      %397 = vmatpush1.bf16.msra.mxu0 0
      %398 = vmatprep.subr.bf16.mxu0 0
      %399 = vmatpush1.bf16.msra.mxu0 0
      %400 = vmatprep.subr.bf16.mxu0 0
      %401 = vmatpush1.bf16.msra.mxu0 0
      %402 = vmatprep.mubr.bf16.mxu0 0
      %403 = vmatmul.mubr.bf16.gmra.mrb[0].mxu0 %v318
      %v404 = vpop.f32.mrb[0].mxu0
      %v405 = vadd.f32 %v308, %v404
      %v406 = vpop.f32.mrb[0].mxu0
      %v407 = vpop.f32.mrb[0].mxu0
      %v408 = vadd.f32 %v308, %v407
      %v409 = vpop.f32.mrb[0].mxu0
      %410 = vmatprep.mubr.bf16.mxu0 0
      %411 = vmatmul.mubr.bf16.gmra.mrb[0].mxu0 %v319
      %v412 = vpop.f32.mrb[0].mxu0
      %v413 = vadd.f32 %v308, %v412
      %v414 = vpop.f32.mrb[0].mxu0
      %v415 = vpop.f32.mrb[0].mxu0
      %v416 = vadd.f32 %v308, %v415
      %v417 = vpop.f32.mrb[0].mxu0
      %418 = vdwg.mxu0
      %v419 = vmul.f32 %v405, 0.5
      %v420 = vmul.f32 %v408, 0.5
      %v421 = vmul.f32 %v413, 0.5
      %v422 = vmul.f32 %v416, 0.5
      %v423 = vmul.f32 %v405, 0.70710677
      %v424 = vmul.f32 %v408, 0.70710677
      %v425 = vmul.f32 %v413, 0.70710677
      %v426 = vmul.f32 %v416, 0.70710677
      %v427 = verf.f32.pop %v423
      %v428 = verf.f32.pop %v424
      %v429 = verf.f32.pop %v425
      %v430 = verf.f32.pop %v426
      %v431 = vadd.f32 %v427, 1.0
      %v432 = vadd.f32 %v428, 1.0
      %v433 = vadd.f32 %v429, 1.0
      %v434 = vadd.f32 %v430, 1.0
      %v435 = vmul.f32 %v419, %v431
      %v436 = vmul.f32 %v420, %v432
      %v437 = vmul.f32 %v421, %v433
      %v438 = vmul.f32 %v422, %v434
      %v439 = vld [vmem:[%s3] sm:$0xf]
      %v440 = vld [vmem:[%s3 + $0x4] sm:$0xf]
      %v441 = vld [vmem:[%s3 + $0x8] sm:$0xf]
      %v442 = vld [vmem:[%s3 + $0xc] sm:$0xf]
      %v443 = vld [vmem:[%s3 + $0x10] sm:$0xf]
      %v444 = vld [vmem:[%s3 + $0x14] sm:$0xf]
      %v445 = vld [vmem:[%s3 + $0x18] sm:$0xf]
      %v446 = vld [vmem:[%s3 + $0x1c] sm:$0xf]
      %v447 = vld [vmem:[%s3 + $0x20] sm:$0xf]
      %v448 = vld [vmem:[%s3 + $0x24] sm:$0xf]
      %v449 = vld [vmem:[%s3 + $0x28] sm:$0xf]
      %v450 = vld [vmem:[%s3 + $0x2c] sm:$0xf]
      %v451 = vld [vmem:[%s3 + $0x30] sm:$0xf]
      %v452 = vld [vmem:[%s3 + $0x34] sm:$0xf]
      %v453 = vld [vmem:[%s3 + $0x38] sm:$0xf]
      %v454 = vld [vmem:[%s3 + $0x3c] sm:$0xf]
      %v455 = vld [vmem:[%s4] sm:$0x1]
      %v456 = vpack.c.bf16 %v436, %v435
      %v457 = vpack.c.bf16 %v438, %v437
      %v459 = vlaneseq
      %v460 = vshrl.u32 %v459, 7
      %v461 = vsub.s32 0, %v460
      %v462 = vrot.slane %v455, %v461
      %v480 = vunpack.c.l.b16 %v439
      %v481 = vunpack.c.l.b16 %v440
      %v482 = vunpack.c.l.b16 %v441
      %v483 = vunpack.c.l.b16 %v442
      %v484 = vunpack.c.l.b16 %v443
      %v485 = vunpack.c.l.b16 %v444
      %v486 = vunpack.c.l.b16 %v445
      %v487 = vunpack.c.l.b16 %v446
      %v488 = vunpack.c.l.b16 %v447
      %v489 = vunpack.c.l.b16 %v448
      %v490 = vunpack.c.l.b16 %v449
      %v491 = vunpack.c.l.b16 %v450
      %v492 = vunpack.c.l.b16 %v451
      %v493 = vunpack.c.l.b16 %v452
      %v494 = vunpack.c.l.b16 %v453
      %v495 = vunpack.c.l.b16 %v454
      %v496 = vpack.c.b16 %v481, %v480
      %v497 = vpack.c.b16 %v483, %v482
      %v498 = vpack.c.b16 %v485, %v484
      %v499 = vpack.c.b16 %v487, %v486
      %v500 = vpack.c.b16 %v489, %v488
      %v501 = vpack.c.b16 %v491, %v490
      %v502 = vpack.c.b16 %v493, %v492
      %v503 = vpack.c.b16 %v495, %v494
      %512 = vmatprep.subr.bf16.mxu0 0
      %513 = vmatpush1.bf16.msra.mxu0 %v496
      %514 = vmatprep.subr.bf16.mxu0 0
      %515 = vmatpush1.bf16.msra.mxu0 %v497
      %516 = vmatprep.subr.bf16.mxu0 0
      %517 = vmatpush1.bf16.msra.mxu0 %v498
      %518 = vmatprep.subr.bf16.mxu0 0
      %519 = vmatpush1.bf16.msra.mxu0 %v499
      %520 = vmatprep.subr.bf16.mxu0 0
      %521 = vmatpush1.bf16.msra.mxu0 %v500
      %522 = vmatprep.subr.bf16.mxu0 0
      %523 = vmatpush1.bf16.msra.mxu0 %v501
      %524 = vmatprep.subr.bf16.mxu0 0
      %525 = vmatpush1.bf16.msra.mxu0 %v502
      %526 = vmatprep.subr.bf16.mxu0 0
      %527 = vmatpush1.bf16.msra.mxu0 %v503
      %528 = vmatprep.subr.bf16.mxu0 0
      %529 = vmatpush1.bf16.msra.mxu0 0
      %530 = vmatprep.subr.bf16.mxu0 0
      %531 = vmatpush1.bf16.msra.mxu0 0
      %532 = vmatprep.subr.bf16.mxu0 0
      %533 = vmatpush1.bf16.msra.mxu0 0
      %534 = vmatprep.subr.bf16.mxu0 0
      %535 = vmatpush1.bf16.msra.mxu0 0
      %536 = vmatprep.subr.bf16.mxu0 0
      %537 = vmatpush1.bf16.msra.mxu0 0
      %538 = vmatprep.subr.bf16.mxu0 0
      %539 = vmatpush1.bf16.msra.mxu0 0
      %540 = vmatprep.subr.bf16.mxu0 0
      %541 = vmatpush1.bf16.msra.mxu0 0
      %542 = vmatprep.subr.bf16.mxu0 0
      %543 = vmatpush1.bf16.msra.mxu0 0
      %544 = vmatprep.mubr.bf16.mxu0 0
      %545 = vmatmul.mubr.bf16.gmra.mrb[0].mxu0 %v456
      %v546 = vpop.f32.mrb[0].mxu0
      %v547 = vadd.f32 %v462, %v546
      %v548 = vpop.f32.mrb[0].mxu0
      %v549 = vpop.f32.mrb[0].mxu0
      %v550 = vadd.f32 %v462, %v549
      %v551 = vpop.f32.mrb[0].mxu0
      %552 = vmatprep.mubr.bf16.mxu0 0
      %553 = vmatmul.mubr.bf16.gmra.mrb[0].mxu0 %v457
      %v554 = vpop.f32.mrb[0].mxu0
      %v555 = vadd.f32 %v462, %v554
      %v556 = vpop.f32.mrb[0].mxu0
      %v557 = vpop.f32.mrb[0].mxu0
      %v558 = vadd.f32 %v462, %v557
      %v559 = vpop.f32.mrb[0].mxu0
      %560 = vdwg.mxu0
      %v561 = vmul.f32 %v547, 0.5
      %v562 = vmul.f32 %v550, 0.5
      %v563 = vmul.f32 %v555, 0.5
      %v564 = vmul.f32 %v558, 0.5
      %v565 = vmul.f32 %v547, 0.70710677
      %v566 = vmul.f32 %v550, 0.70710677
      %v567 = vmul.f32 %v555, 0.70710677
      %v568 = vmul.f32 %v558, 0.70710677
      %v569 = verf.f32.pop %v565
      %v570 = verf.f32.pop %v566
      %v571 = verf.f32.pop %v567
      %v572 = verf.f32.pop %v568
      %v573 = vadd.f32 %v569, 1.0
      %v574 = vadd.f32 %v570, 1.0
      %v575 = vadd.f32 %v571, 1.0
      %v576 = vadd.f32 %v572, 1.0
      %v577 = vmul.f32 %v561, %v573
      %v578 = vmul.f32 %v562, %v574
      %v579 = vmul.f32 %v563, %v575
      %v580 = vmul.f32 %v564, %v576
      %v581 = vld [vmem:[%s5] sm:$0xf]
      %v582 = vld [vmem:[%s5 + $0x4] sm:$0xf]
      %v583 = vld [vmem:[%s5 + $0x8] sm:$0xf]
      %v584 = vld [vmem:[%s5 + $0xc] sm:$0xf]
      %v585 = vld [vmem:[%s5 + $0x10] sm:$0xf]
      %v586 = vld [vmem:[%s5 + $0x14] sm:$0xf]
      %v587 = vld [vmem:[%s5 + $0x18] sm:$0xf]
      %v588 = vld [vmem:[%s5 + $0x1c] sm:$0xf]
      %v589 = vld [vmem:[%s5 + $0x20] sm:$0xf]
      %v590 = vld [vmem:[%s5 + $0x24] sm:$0xf]
      %v591 = vld [vmem:[%s5 + $0x28] sm:$0xf]
      %v592 = vld [vmem:[%s5 + $0x2c] sm:$0xf]
      %v593 = vld [vmem:[%s5 + $0x30] sm:$0xf]
      %v594 = vld [vmem:[%s5 + $0x34] sm:$0xf]
      %v595 = vld [vmem:[%s5 + $0x38] sm:$0xf]
      %v596 = vld [vmem:[%s5 + $0x3c] sm:$0xf]
      %v597 = vld [vmem:[%s6] sm:$0x1]
      %v598 = vpack.c.bf16 %v578, %v577
      %v599 = vpack.c.bf16 %v580, %v579
      %v601 = vlaneseq
      %v602 = vshrl.u32 %v601, 7
      %v603 = vsub.s32 0, %v602
      %v604 = vrot.slane %v597, %v603
      %v622 = vunpack.c.l.b16 %v581
      %v623 = vunpack.c.l.b16 %v582
      %v624 = vunpack.c.l.b16 %v583
      %v625 = vunpack.c.l.b16 %v584
      %v626 = vunpack.c.l.b16 %v585
      %v627 = vunpack.c.l.b16 %v586
      %v628 = vunpack.c.l.b16 %v587
      %v629 = vunpack.c.l.b16 %v588
      %v630 = vunpack.c.l.b16 %v589
      %v631 = vunpack.c.l.b16 %v590
      %v632 = vunpack.c.l.b16 %v591
      %v633 = vunpack.c.l.b16 %v592
      %v634 = vunpack.c.l.b16 %v593
      %v635 = vunpack.c.l.b16 %v594
      %v636 = vunpack.c.l.b16 %v595
      %v637 = vunpack.c.l.b16 %v596
      %v638 = vpack.c.b16 %v623, %v622
      %v639 = vpack.c.b16 %v625, %v624
      %v640 = vpack.c.b16 %v627, %v626
      %v641 = vpack.c.b16 %v629, %v628
      %v642 = vpack.c.b16 %v631, %v630
      %v643 = vpack.c.b16 %v633, %v632
      %v644 = vpack.c.b16 %v635, %v634
      %v645 = vpack.c.b16 %v637, %v636
      %654 = vmatprep.subr.bf16.mxu0 0
      %655 = vmatpush1.bf16.msra.mxu0 %v638
      %656 = vmatprep.subr.bf16.mxu0 0
      %657 = vmatpush1.bf16.msra.mxu0 %v639
      %658 = vmatprep.subr.bf16.mxu0 0
      %659 = vmatpush1.bf16.msra.mxu0 %v640
      %660 = vmatprep.subr.bf16.mxu0 0
      %661 = vmatpush1.bf16.msra.mxu0 %v641
      %662 = vmatprep.subr.bf16.mxu0 0
      %663 = vmatpush1.bf16.msra.mxu0 %v642
      %664 = vmatprep.subr.bf16.mxu0 0
      %665 = vmatpush1.bf16.msra.mxu0 %v643
      %666 = vmatprep.subr.bf16.mxu0 0
      %667 = vmatpush1.bf16.msra.mxu0 %v644
      %668 = vmatprep.subr.bf16.mxu0 0
      %669 = vmatpush1.bf16.msra.mxu0 %v645
      %670 = vmatprep.subr.bf16.mxu0 0
      %671 = vmatpush1.bf16.msra.mxu0 0
      %672 = vmatprep.subr.bf16.mxu0 0
      %673 = vmatpush1.bf16.msra.mxu0 0
      %674 = vmatprep.subr.bf16.mxu0 0
      %675 = vmatpush1.bf16.msra.mxu0 0
      %676 = vmatprep.subr.bf16.mxu0 0
      %677 = vmatpush1.bf16.msra.mxu0 0
      %678 = vmatprep.subr.bf16.mxu0 0
      %679 = vmatpush1.bf16.msra.mxu0 0
      %680 = vmatprep.subr.bf16.mxu0 0
      %681 = vmatpush1.bf16.msra.mxu0 0
      %682 = vmatprep.subr.bf16.mxu0 0
      %683 = vmatpush1.bf16.msra.mxu0 0
      %684 = vmatprep.subr.bf16.mxu0 0
      %685 = vmatpush1.bf16.msra.mxu0 0
      %686 = vmatprep.mubr.bf16.mxu0 0
      %687 = vmatmul.mubr.bf16.gmra.mrb[0].mxu0 %v598
      %v688 = vpop.f32.mrb[0].mxu0
      %v689 = vadd.f32 %v604, %v688
      %v690 = vpop.f32.mrb[0].mxu0
      %v691 = vpop.f32.mrb[0].mxu0
      %v692 = vadd.f32 %v604, %v691
      %v693 = vpop.f32.mrb[0].mxu0
      %694 = vmatprep.mubr.bf16.mxu0 0
      %695 = vmatmul.mubr.bf16.gmra.mrb[0].mxu0 %v599
      %v696 = vpop.f32.mrb[0].mxu0
      %v697 = vadd.f32 %v604, %v696
      %v698 = vpop.f32.mrb[0].mxu0
      %v699 = vpop.f32.mrb[0].mxu0
      %v700 = vadd.f32 %v604, %v699
      %v701 = vpop.f32.mrb[0].mxu0
      %702 = vdwg.mxu0
      %v703 = vmul.f32 %v689, 0.5
      %v704 = vmul.f32 %v692, 0.5
      %v705 = vmul.f32 %v697, 0.5
      %v706 = vmul.f32 %v700, 0.5
      %v707 = vmul.f32 %v689, 0.70710677
      %v708 = vmul.f32 %v692, 0.70710677
      %v709 = vmul.f32 %v697, 0.70710677
      %v710 = vmul.f32 %v700, 0.70710677
      %v711 = verf.f32.pop %v707
      %v712 = verf.f32.pop %v708
      %v713 = verf.f32.pop %v709
      %v714 = verf.f32.pop %v710
      %v715 = vadd.f32 %v711, 1.0
      %v716 = vadd.f32 %v712, 1.0
      %v717 = vadd.f32 %v713, 1.0
      %v718 = vadd.f32 %v714, 1.0
      %v719 = vmul.f32 %v703, %v715
      %v720 = vmul.f32 %v704, %v716
      %v721 = vmul.f32 %v705, %v717
      %v722 = vmul.f32 %v706, %v718
      %723 = vst [vmem:[%s280] sm:$0xff] %v719
      %724 = vst [vmem:[%s280 + $0x8] sm:$0xff] %v720
      %725 = vst [vmem:[%s280 + $0x10] sm:$0xff] %v721
      %726 = vst [vmem:[%s280 + $0x18] sm:$0xff] %v722
      %s727 = smul.u32 4, %s18
      %p728 = scmp.lt.s32.totalorder %s727, 7
      %s729 = scalar_select %p728, %s727, 7
      %s730 = smul.addr %s729, 8
      %s731 = scalar_lea.vmem %s7, %s730
      // Predicated region
      $region49: #{fused_fc_block.1} parent=47 // pred_check
        %p732 = pneg %p188
      $region50: #{fused_fc_block.1} parent=47 // pred_check_branch
        %734 = sbr.rel (%p732) target = $region52
      $region51: #{fused_fc_block.1} parent=47 // pred_region
        %s735 = smul.u32 4, %s18
      $region52: #{fused_fc_block.1} parent=47 // pred_fallthru
        _
    $region48: #{fused_fc_block.1} parent=5 // pred_fallthru
      _
    %p736 = scmp.le.s32.totalorder 2, %s13
    // Predicated region
    $region53: #{fused_fc_block.1} parent=5 // pred_check
      %p737 = pneg %p736
    $region54: #{fused_fc_block.1} parent=5 // pred_check_branch
      %739 = sbr.rel (%p737) target = $region56
    $region55: #{fused_fc_block.1} parent=5 // pred_region
      %s740 = ssub.s32 %s13, 2
      // Predicated region
      $region57: #{fused_fc_block.1} parent=55 // pred_check
        %p741 = pneg %p194
      $region58: #{fused_fc_block.1} parent=55 // pred_check_branch
        %743 = sbr.rel (%p741) target = $region60
      $region59: #{fused_fc_block.1} parent=55 // pred_region
        %s744 = smul.u32 4, %s19
        %p745 = scmp.lt.s32.totalorder %s744, 7
        %s746 = scalar_select %p745, %s744, 7
        %s747 = smul.addr %s746, 8
        %s748 = scalar_lea.vmem %s7, %s747
      $region60: #{fused_fc_block.1} parent=55 // pred_fallthru
        _
    $region56: #{fused_fc_block.1} parent=5 // pred_fallthru
      _
  $region6: #{fused_fc_block.1} parent=0 // loop_footer
    %s17 = sadd.s32 1, %s13
  $region7: #{fused_fc_block.1} parent=0 // loop_footer_branch
    %12 = sbr.rel target = $region3
  $region8: #{fused_fc_block.1} parent=0 // loop_exit
    _

// kernel: fused_fc_block.1
$region0: #{fused_fc_block.1}
  #allocation0 [shape = 'u32[]', space=smem, size = 0x4, offset = 0x4, fixed_abs, tag = 'smem constant byte address 0x4 - core index']
  #allocation1 [shape = 'u32[144,128]{1,0:T(1,128)}', space=vmem, size = 0x12000, scoped, tag = 'internal scratch']
  %s0 = inlined_call_operand.vmem [shape: bf16[64,128], index: 0, kind: input, shape index: {}]
  %s1 = inlined_call_operand.vmem [shape: bf16[128,128], index: 1, kind: input, shape index: {}]
  %s2 = inlined_call_operand.vmem [shape: f32[1,128], index: 2, kind: input, shape index: {}]
  %s3 = inlined_call_operand.vmem [shape: bf16[128,128], index: 3, kind: input, shape index: {}]
  %s4 = inlined_call_operand.vmem [shape: f32[1,128], index: 4, kind: input, shape index: {}]
  %s5 = inlined_call_operand.vmem [shape: bf16[128,128], index: 5, kind: input, shape index: {}]
  %s6 = inlined_call_operand.vmem [shape: f32[1,128], index: 6, kind: input, shape index: {}]
  %s7 = inlined_call_operand.vmem [shape: f32[64,128], index: 7, kind: output, shape index: {}]
  %s8 = sld [smem:[#allocation0]]
  $region61: #{fused_fc_block.1} parent=0
    _
  %s10 = ssub.s32 1, %s8
  %s11 = scalar_select 0, %s10, %s8
  loop: start=0, step=1, limit=4
  $region2: #{fused_fc_block.1} parent=0 // loop_pre_header
    _
  $region3: #{fused_fc_block.1} parent=0 // loop_header
    %s13 = sphi 0, %s17
    %p14 = scmp.ge.s32.totalorder %s13, 4
    %s23 = sphi 0, %s25
    %s26 = sphi 0, %s23
    %s27 = sphi 0, %s26
    %s43 = sphi 0, %s27
    %s47 = sphi 0, %s47
    %s49 = sphi 0, %s47
    %s50 = sphi 0, %s49
    %s64 = sphi 0, %s50
    %s68 = sphi 0, %s68
    %s70 = sphi 0, %s68
    %s71 = sphi 0, %s70
    %s85 = sphi 0, %s71
    %s89 = sphi 0, %s89
    %s91 = sphi 0, %s89
    %s92 = sphi 0, %s91
    %s106 = sphi 0, %s92
    %s110 = sphi 0, %s110
    %s112 = sphi 0, %s110
    %s113 = sphi 0, %s112
    %s127 = sphi 0, %s113
    %s131 = sphi 0, %s131
    %s133 = sphi 0, %s131
    %s134 = sphi 0, %s133
    %s148 = sphi 0, %s134
    %s152 = sphi 0, %s152
    %s154 = sphi 0, %s152
    %s155 = sphi 0, %s154
    %s169 = sphi 0, %s155
    %s175 = sphi 0, %s177
    %s178 = sphi 0, %s175
    %s179 = sphi 0, %s178
    %s195 = sphi 0, %s179
  $region4: #{fused_fc_block.1} parent=0 // loop_header_branch
    %16 = sbr.rel (%p14) target = $region8
  $region5: #{fused_fc_block.1} parent=0 // loop_body
    %s18 = ssub.s32 %s13, 1
    %s19 = ssub.s32 %s13, 2
    %s20 = sadd.s32 %s13, 1
    %s21 = ssub.s32 %s13, %s20
    %p22 = scmp.eq.s32.totalorder %s21, 0
    %s24 = sadd.s32 %s23, 1
    %s25 = scalar_select %p22, %s23, %s24
    %p28 = pneg %p22
    %p29 = scmp.eq.s32.totalorder %s13, 1
    %p30 = por %p28, %p29
    %p31 = scmp.ne.s32.totalorder %s23, %s26
    %p32 = scmp.eq.s32.totalorder %s13, 0
    %p33 = por %p31, %p32
    %p34 = scmp.ne.s32.totalorder %s23, %s26
    %p35 = scmp.eq.s32.totalorder %s18, 1
    %p36 = por %p34, %p35
    %p37 = scmp.ne.s32.totalorder %s26, %s27
    %p38 = scmp.eq.s32.totalorder %s18, 0
    %p39 = por %p37, %p38
    %p40 = scmp.ne.s32.totalorder %s26, %s27
    %p41 = scmp.eq.s32.totalorder %s19, 1
    %p42 = por %p40, %p41
    %p44 = scmp.ne.s32.totalorder %s27, %s43
    %p45 = scmp.eq.s32.totalorder %s19, 0
    %p46 = por %p44, %p45
    %s48 = sadd.s32 %s47, 1
    %p51 = scmp.eq.s32.totalorder %s13, 1
    %p52 = scmp.ne.s32.totalorder %s47, %s49
    %p53 = scmp.eq.s32.totalorder %s13, 0
    %p54 = por %p52, %p53
    %p55 = scmp.ne.s32.totalorder %s47, %s49
    %p56 = scmp.eq.s32.totalorder %s18, 1
    %p57 = por %p55, %p56
    %p58 = scmp.ne.s32.totalorder %s49, %s50
    %p59 = scmp.eq.s32.totalorder %s18, 0
    %p60 = por %p58, %p59
    %p61 = scmp.ne.s32.totalorder %s49, %s50
    %p62 = scmp.eq.s32.totalorder %s19, 1
    %p63 = por %p61, %p62
    %p65 = scmp.ne.s32.totalorder %s50, %s64
    %p66 = scmp.eq.s32.totalorder %s19, 0
    %p67 = por %p65, %p66
    %s69 = sadd.s32 %s68, 1
    %p72 = scmp.eq.s32.totalorder %s13, 1
    %p73 = scmp.ne.s32.totalorder %s68, %s70
    %p74 = scmp.eq.s32.totalorder %s13, 0
    %p75 = por %p73, %p74
    %p76 = scmp.ne.s32.totalorder %s68, %s70
    %p77 = scmp.eq.s32.totalorder %s18, 1
    %p78 = por %p76, %p77
    %p79 = scmp.ne.s32.totalorder %s70, %s71
    %p80 = scmp.eq.s32.totalorder %s18, 0
    %p81 = por %p79, %p80
    %p82 = scmp.ne.s32.totalorder %s70, %s71
    %p83 = scmp.eq.s32.totalorder %s19, 1
    %p84 = por %p82, %p83
    %p86 = scmp.ne.s32.totalorder %s71, %s85
    %p87 = scmp.eq.s32.totalorder %s19, 0
    %p88 = por %p86, %p87
    %s90 = sadd.s32 %s89, 1
    %p93 = scmp.eq.s32.totalorder %s13, 1
    %p94 = scmp.ne.s32.totalorder %s89, %s91
    %p95 = scmp.eq.s32.totalorder %s13, 0
    %p96 = por %p94, %p95
    %p97 = scmp.ne.s32.totalorder %s89, %s91
    %p98 = scmp.eq.s32.totalorder %s18, 1
    %p99 = por %p97, %p98
    %p100 = scmp.ne.s32.totalorder %s91, %s92
    %p101 = scmp.eq.s32.totalorder %s18, 0
    %p102 = por %p100, %p101
    %p103 = scmp.ne.s32.totalorder %s91, %s92
    %p104 = scmp.eq.s32.totalorder %s19, 1
    %p105 = por %p103, %p104
    %p107 = scmp.ne.s32.totalorder %s92, %s106
    %p108 = scmp.eq.s32.totalorder %s19, 0
    %p109 = por %p107, %p108
    %s111 = sadd.s32 %s110, 1
    %p114 = scmp.eq.s32.totalorder %s13, 1
    %p115 = scmp.ne.s32.totalorder %s110, %s112
    %p116 = scmp.eq.s32.totalorder %s13, 0
    %p117 = por %p115, %p116
    %p118 = scmp.ne.s32.totalorder %s110, %s112
    %p119 = scmp.eq.s32.totalorder %s18, 1
    %p120 = por %p118, %p119
    %p121 = scmp.ne.s32.totalorder %s112, %s113
    %p122 = scmp.eq.s32.totalorder %s18, 0
    %p123 = por %p121, %p122
    %p124 = scmp.ne.s32.totalorder %s112, %s113
    %p125 = scmp.eq.s32.totalorder %s19, 1
    %p126 = por %p124, %p125
    %p128 = scmp.ne.s32.totalorder %s113, %s127
    %p129 = scmp.eq.s32.totalorder %s19, 0
    %p130 = por %p128, %p129
    %s132 = sadd.s32 %s131, 1
    %p135 = scmp.eq.s32.totalorder %s13, 1
    %p136 = scmp.ne.s32.totalorder %s131, %s133
    %p137 = scmp.eq.s32.totalorder %s13, 0
    %p138 = por %p136, %p137
    %p139 = scmp.ne.s32.totalorder %s131, %s133
    %p140 = scmp.eq.s32.totalorder %s18, 1
    %p141 = por %p139, %p140
    %p142 = scmp.ne.s32.totalorder %s133, %s134
    %p143 = scmp.eq.s32.totalorder %s18, 0
    %p144 = por %p142, %p143
    %p145 = scmp.ne.s32.totalorder %s133, %s134
    %p146 = scmp.eq.s32.totalorder %s19, 1
    %p147 = por %p145, %p146
    %p149 = scmp.ne.s32.totalorder %s134, %s148
    %p150 = scmp.eq.s32.totalorder %s19, 0
    %p151 = por %p149, %p150
    %s153 = sadd.s32 %s152, 1
    %p156 = scmp.eq.s32.totalorder %s13, 1
    %p157 = scmp.ne.s32.totalorder %s152, %s154
    %p158 = scmp.eq.s32.totalorder %s13, 0
    %p159 = por %p157, %p158
    %p160 = scmp.ne.s32.totalorder %s152, %s154
    %p161 = scmp.eq.s32.totalorder %s18, 1
    %p162 = por %p160, %p161
    %p163 = scmp.ne.s32.totalorder %s154, %s155
    %p164 = scmp.eq.s32.totalorder %s18, 0
    %p165 = por %p163, %p164
    %p166 = scmp.ne.s32.totalorder %s154, %s155
    %p167 = scmp.eq.s32.totalorder %s19, 1
    %p168 = por %p166, %p167
    %p170 = scmp.ne.s32.totalorder %s155, %s169
    %p171 = scmp.eq.s32.totalorder %s19, 0
    %p172 = por %p170, %p171
    %s173 = ssub.s32 %s13, %s20
    %p174 = scmp.eq.s32.totalorder %s173, 0
    %s176 = sadd.s32 %s175, 1
    %s177 = scalar_select %p174, %s175, %s176
    %p180 = pneg %p174
    %p181 = scmp.eq.s32.totalorder %s13, 1
    %p182 = por %p180, %p181
    %p183 = scmp.ne.s32.totalorder %s175, %s178
    %p184 = scmp.eq.s32.totalorder %s13, 0
    %p185 = por %p183, %p184
    %p186 = scmp.ne.s32.totalorder %s175, %s178
    %p187 = scmp.eq.s32.totalorder %s18, 1
    %p188 = por %p186, %p187
    %p189 = scmp.ne.s32.totalorder %s178, %s179
    %p190 = scmp.eq.s32.totalorder %s18, 0
    %p191 = por %p189, %p190
    %p192 = scmp.ne.s32.totalorder %s178, %s179
    %p193 = scmp.eq.s32.totalorder %s19, 1
    %p194 = por %p192, %p193
    %p196 = scmp.ne.s32.totalorder %s179, %s195
    %p197 = scmp.eq.s32.totalorder %s19, 0
    %p198 = por %p196, %p197
    %p199 = scmp.le.s32.totalorder 1, %s13
    %p200 = scmp.lt.s32.totalorder %s13, 3
    %p201 = pnand %p199, %p200
    %p202 = pneg %p201
    // Predicated region
    $region9: #{fused_fc_block.1} parent=5 // pred_check
      _
    $region10: #{fused_fc_block.1} parent=5 // pred_check_branch
      %204 = sbr.rel (%p201) target = $region12
    $region11: #{fused_fc_block.1} parent=5 // pred_region
      %s205 = ssub.s32 %s13, 1
      // Predicated region
      $region13: #{fused_fc_block.1} parent=11 // pred_check
        %p206 = pneg %p60
      $region14: #{fused_fc_block.1} parent=11 // pred_check_branch
        %208 = sbr.rel (%p206) target = $region16
      $region15: #{fused_fc_block.1} parent=11 // pred_region
        _
      $region16: #{fused_fc_block.1} parent=11 // pred_fallthru
        _
      // Predicated region
      $region17: #{fused_fc_block.1} parent=11 // pred_check
        %p209 = pneg %p81
      $region18: #{fused_fc_block.1} parent=11 // pred_check_branch
        %211 = sbr.rel (%p209) target = $region20
      $region19: #{fused_fc_block.1} parent=11 // pred_region
        _
      $region20: #{fused_fc_block.1} parent=11 // pred_fallthru
        _
      // Predicated region
      $region21: #{fused_fc_block.1} parent=11 // pred_check
        %p212 = pneg %p102
      $region22: #{fused_fc_block.1} parent=11 // pred_check_branch
        %214 = sbr.rel (%p212) target = $region24
      $region23: #{fused_fc_block.1} parent=11 // pred_region
        _
      $region24: #{fused_fc_block.1} parent=11 // pred_fallthru
        _
      // Predicated region
      $region25: #{fused_fc_block.1} parent=11 // pred_check
        %p215 = pneg %p123
      $region26: #{fused_fc_block.1} parent=11 // pred_check_branch
        %217 = sbr.rel (%p215) target = $region28
      $region27: #{fused_fc_block.1} parent=11 // pred_region
        _
      $region28: #{fused_fc_block.1} parent=11 // pred_fallthru
        _
      // Predicated region
      $region29: #{fused_fc_block.1} parent=11 // pred_check
        %p218 = pneg %p144
      $region30: #{fused_fc_block.1} parent=11 // pred_check_branch
        %220 = sbr.rel (%p218) target = $region32
      $region31: #{fused_fc_block.1} parent=11 // pred_region
        _
      $region32: #{fused_fc_block.1} parent=11 // pred_fallthru
        _
      // Predicated region
      $region33: #{fused_fc_block.1} parent=11 // pred_check
        %p221 = pneg %p165
      $region34: #{fused_fc_block.1} parent=11 // pred_check_branch
        %223 = sbr.rel (%p221) target = $region36
      $region35: #{fused_fc_block.1} parent=11 // pred_region
        _
      $region36: #{fused_fc_block.1} parent=11 // pred_fallthru
        _
    $region12: #{fused_fc_block.1} parent=5 // pred_fallthru
      _
    %p224 = scmp.lt.s32.totalorder %s13, 2
    // Predicated region
    $region37: #{fused_fc_block.1} parent=5 // pred_check
      %p225 = pneg %p224
    $region38: #{fused_fc_block.1} parent=5 // pred_check_branch
      %227 = sbr.rel (%p225) target = $region40
    $region39: #{fused_fc_block.1} parent=5 // pred_region
      // Predicated region
      $region41: #{fused_fc_block.1} parent=39 // pred_check
        %p228 = pneg %p33
      $region42: #{fused_fc_block.1} parent=39 // pred_check_branch
        %230 = sbr.rel (%p228) target = $region44
      $region43: #{fused_fc_block.1} parent=39 // pred_region
        %s231 = smul.u32 4, %s13
        %p232 = scmp.lt.s32.totalorder %s231, 7
        %s233 = scalar_select %p232, %s231, 7
        %s234 = smul.addr %s233, 4
        %s235 = scalar_lea.vmem %s0, %s234
        %s236 = smul.u32 4, %s13
      $region44: #{fused_fc_block.1} parent=39 // pred_fallthru
        _
    $region40: #{fused_fc_block.1} parent=5 // pred_fallthru
      _
    %p237 = scmp.le.s32.totalorder 1, %s13
    %p238 = scmp.lt.s32.totalorder %s13, 3
    %p239 = pnand %p237, %p238
    %p240 = pneg %p239
    // Predicated region
    $region45: #{fused_fc_block.1} parent=5 // pred_check
      _
    $region46: #{fused_fc_block.1} parent=5 // pred_check_branch
      %242 = sbr.rel (%p239) target = $region48
    $region47: #{fused_fc_block.1} parent=5 // pred_region
      %s243 = ssub.s32 %s13, 1
      %s244 = smul.u32 4, %s18
      %p245 = scmp.lt.s32.totalorder %s244, 7
      %s246 = scalar_select %p245, %s244, 7
      %s247 = smul.addr %s246, 4
      %s248 = scalar_lea.vmem %s0, %s247
      %p249 = pneg %p39
      %p250 = pneg %p36
      %p251 = pneg %p60
      %p252 = pneg %p57
      %p253 = pneg %p81
      %p254 = pneg %p78
      %p255 = pneg %p102
      %p256 = pneg %p99
      %p257 = pneg %p123
      %p258 = pneg %p120
      %p259 = pneg %p144
      %p260 = pneg %p141
      %p261 = pneg %p165
      %p262 = pneg %p162
      %p263 = pneg %p191
      %p264 = pneg %p188
      %s265 = smul.u32 4, %s18
      %p266 = scmp.lt.s32.totalorder %s265, 7
      %s267 = scalar_select %p266, %s265, 7
      %s268 = smul.addr %s267, 8
      %s269 = scalar_lea.vmem %s7, %s268
      %s270 = smul.u32 4, %s18
      %p271 = scmp.lt.s32.totalorder %s270, 7
      %s272 = scalar_select %p271, %s270, 7
      %s273 = smul.addr %s272, 4
      %s274 = scalar_lea.vmem %s0, %s273
      %s275 = smul.u32 4, %s18
      %s276 = smul.u32 4, %s18
      %p277 = scmp.lt.s32.totalorder %s276, 7
      %s278 = scalar_select %p277, %s276, 7
      %s279 = smul.addr %s278, 8
      %s280 = scalar_lea.vmem %s7, %s279
      %s281 = smul.u32 4, %s18
      %v283 = vld [vmem:[%s274] sm:$0xf]
      %v284 = vld [vmem:[%s274 + $0x4] sm:$0xf]
      %v285 = vld [vmem:[%s274 + $0x8] sm:$0xf]
      %v286 = vld [vmem:[%s274 + $0xc] sm:$0xf]
      %v287 = vld [vmem:[%s1] sm:$0xf]
      %v288 = vld [vmem:[%s1 + $0x4] sm:$0xf]
      %v289 = vld [vmem:[%s1 + $0x8] sm:$0xf]
      %v290 = vld [vmem:[%s1 + $0xc] sm:$0xf]
      %v291 = vld [vmem:[%s1 + $0x10] sm:$0xf]
      %v292 = vld [vmem:[%s1 + $0x14] sm:$0xf]
      %v293 = vld [vmem:[%s1 + $0x18] sm:$0xf]
      %v294 = vld [vmem:[%s1 + $0x1c] sm:$0xf]
      %v295 = vld [vmem:[%s1 + $0x20] sm:$0xf]
      %v296 = vld [vmem:[%s1 + $0x24] sm:$0xf]
      %v297 = vld [vmem:[%s1 + $0x28] sm:$0xf]
      %v298 = vld [vmem:[%s1 + $0x2c] sm:$0xf]
      %v299 = vld [vmem:[%s1 + $0x30] sm:$0xf]
      %v300 = vld [vmem:[%s1 + $0x34] sm:$0xf]
      %v301 = vld [vmem:[%s1 + $0x38] sm:$0xf]
      %v302 = vld [vmem:[%s1 + $0x3c] sm:$0xf]
      %v303 = vld [vmem:[%s2] sm:$0x1]
      %v305 = vlaneseq
      %v306 = vshrl.u32 %v305, 7
      %v307 = vsub.s32 0, %v306
      %v308 = vrot.slane %v303, %v307
      %v314 = vunpack.c.l.b16 %v283
      %v315 = vunpack.c.l.b16 %v284
      %v316 = vunpack.c.l.b16 %v285
      %v317 = vunpack.c.l.b16 %v286
      %v318 = vpack.c.b16 %v315, %v314
      %v319 = vpack.c.b16 %v317, %v316
      %v338 = vunpack.c.l.b16 %v287
      %v339 = vunpack.c.l.b16 %v288
      %v340 = vunpack.c.l.b16 %v289
      %v341 = vunpack.c.l.b16 %v290
      %v342 = vunpack.c.l.b16 %v291
      %v343 = vunpack.c.l.b16 %v292
      %v344 = vunpack.c.l.b16 %v293
      %v345 = vunpack.c.l.b16 %v294
      %v346 = vunpack.c.l.b16 %v295
      %v347 = vunpack.c.l.b16 %v296
      %v348 = vunpack.c.l.b16 %v297
      %v349 = vunpack.c.l.b16 %v298
      %v350 = vunpack.c.l.b16 %v299
      %v351 = vunpack.c.l.b16 %v300
      %v352 = vunpack.c.l.b16 %v301
      %v353 = vunpack.c.l.b16 %v302
      %v354 = vpack.c.b16 %v339, %v338
      %v355 = vpack.c.b16 %v341, %v340
      %v356 = vpack.c.b16 %v343, %v342
      %v357 = vpack.c.b16 %v345, %v344
      %v358 = vpack.c.b16 %v347, %v346
      %v359 = vpack.c.b16 %v349, %v348
      %v360 = vpack.c.b16 %v351, %v350
      %v361 = vpack.c.b16 %v353, %v352
      %370 = vmatprep.subr.bf16.mxu0 0
      %371 = vmatpush1.bf16.msra.mxu0 %v354
      %372 = vmatprep.subr.bf16.mxu0 0
      %373 = vmatpush1.bf16.msra.mxu0 %v355
      %374 = vmatprep.subr.bf16.mxu0 0
      %375 = vmatpush1.bf16.msra.mxu0 %v356
      %376 = vmatprep.subr.bf16.mxu0 0
      %377 = vmatpush1.bf16.msra.mxu0 %v357
      %378 = vmatprep.subr.bf16.mxu0 0
      %379 = vmatpush1.bf16.msra.mxu0 %v358
      %380 = vmatprep.subr.bf16.mxu0 0
      %381 = vmatpush1.bf16.msra.mxu0 %v359
      %382 = vmatprep.subr.bf16.mxu0 0
      %383 = vmatpush1.bf16.msra.mxu0 %v360
      %384 = vmatprep.subr.bf16.mxu0 0
      %385 = vmatpush1.bf16.msra.mxu0 %v361
      %386 = vmatprep.subr.bf16.mxu0 0
      %387 = vmatpush1.bf16.msra.mxu0 0
      %388 = vmatprep.subr.bf16.mxu0 0
      %389 = vmatpush1.bf16.msra.mxu0 0
      %390 = vmatprep.subr.bf16.mxu0 0
      %391 = vmatpush1.bf16.msra.mxu0 0
      %392 = vmatprep.subr.bf16.mxu0 0
      %393 = vmatpush1.bf16.msra.mxu0 0
      %394 = vmatprep.subr.bf16.mxu0 0
      %395 = vmatpush1.bf16.msra.mxu0 0
      %396 = vmatprep.subr.bf16.mxu0 0
      %397 = vmatpush1.bf16.msra.mxu0 0
      %398 = vmatprep.subr.bf16.mxu0 0
      %399 = vmatpush1.bf16.msra.mxu0 0
      %400 = vmatprep.subr.bf16.mxu0 0
      %401 = vmatpush1.bf16.msra.mxu0 0
      %402 = vmatprep.mubr.bf16.mxu0 0
      %403 = vmatmul.mubr.bf16.gmra.mrb[0].mxu0 %v318
      %v404 = vpop.f32.mrb[0].mxu0
      %v405 = vadd.f32 %v308, %v404
      %v406 = vpop.f32.mrb[0].mxu0
      %v407 = vpop.f32.mrb[0].mxu0
      %v408 = vadd.f32 %v308, %v407
      %v409 = vpop.f32.mrb[0].mxu0
      %410 = vmatprep.mubr.bf16.mxu0 0
      %411 = vmatmul.mubr.bf16.gmra.mrb[0].mxu0 %v319
      %v412 = vpop.f32.mrb[0].mxu0
      %v413 = vadd.f32 %v308, %v412
      %v414 = vpop.f32.mrb[0].mxu0
      %v415 = vpop.f32.mrb[0].mxu0
      %v416 = vadd.f32 %v308, %v415
      %v417 = vpop.f32.mrb[0].mxu0
      %418 = vdwg.mxu0
      %v419 = vmul.f32 %v405, 0.5
      %v420 = vmul.f32 %v408, 0.5
      %v421 = vmul.f32 %v413, 0.5
      %v422 = vmul.f32 %v416, 0.5
      %v423 = vmul.f32 %v405, 0.70710677
      %v424 = vmul.f32 %v408, 0.70710677
      %v425 = vmul.f32 %v413, 0.70710677
      %v426 = vmul.f32 %v416, 0.70710677
      %v427 = verf.f32.pop %v423
      %v428 = verf.f32.pop %v424
      %v429 = verf.f32.pop %v425
      %v430 = verf.f32.pop %v426
      %v431 = vadd.f32 %v427, 1.0
      %v432 = vadd.f32 %v428, 1.0
      %v433 = vadd.f32 %v429, 1.0
      %v434 = vadd.f32 %v430, 1.0
      %v435 = vmul.f32 %v419, %v431
      %v436 = vmul.f32 %v420, %v432
      %v437 = vmul.f32 %v421, %v433
      %v438 = vmul.f32 %v422, %v434
      %v439 = vld [vmem:[%s3] sm:$0xf]
      %v440 = vld [vmem:[%s3 + $0x4] sm:$0xf]
      %v441 = vld [vmem:[%s3 + $0x8] sm:$0xf]
      %v442 = vld [vmem:[%s3 + $0xc] sm:$0xf]
      %v443 = vld [vmem:[%s3 + $0x10] sm:$0xf]
      %v444 = vld [vmem:[%s3 + $0x14] sm:$0xf]
      %v445 = vld [vmem:[%s3 + $0x18] sm:$0xf]
      %v446 = vld [vmem:[%s3 + $0x1c] sm:$0xf]
      %v447 = vld [vmem:[%s3 + $0x20] sm:$0xf]
      %v448 = vld [vmem:[%s3 + $0x24] sm:$0xf]
      %v449 = vld [vmem:[%s3 + $0x28] sm:$0xf]
      %v450 = vld [vmem:[%s3 + $0x2c] sm:$0xf]
      %v451 = vld [vmem:[%s3 + $0x30] sm:$0xf]
      %v452 = vld [vmem:[%s3 + $0x34] sm:$0xf]
      %v453 = vld [vmem:[%s3 + $0x38] sm:$0xf]
      %v454 = vld [vmem:[%s3 + $0x3c] sm:$0xf]
      %v455 = vld [vmem:[%s4] sm:$0x1]
      %v456 = vpack.c.bf16 %v436, %v435
      %v457 = vpack.c.bf16 %v438, %v437
      %v459 = vlaneseq
      %v460 = vshrl.u32 %v459, 7
      %v461 = vsub.s32 0, %v460
      %v462 = vrot.slane %v455, %v461
      %v480 = vunpack.c.l.b16 %v439
      %v481 = vunpack.c.l.b16 %v440
      %v482 = vunpack.c.l.b16 %v441
      %v483 = vunpack.c.l.b16 %v442
      %v484 = vunpack.c.l.b16 %v443
      %v485 = vunpack.c.l.b16 %v444
      %v486 = vunpack.c.l.b16 %v445
      %v487 = vunpack.c.l.b16 %v446
      %v488 = vunpack.c.l.b16 %v447
      %v489 = vunpack.c.l.b16 %v448
      %v490 = vunpack.c.l.b16 %v449
      %v491 = vunpack.c.l.b16 %v450
      %v492 = vunpack.c.l.b16 %v451
      %v493 = vunpack.c.l.b16 %v452
      %v494 = vunpack.c.l.b16 %v453
      %v495 = vunpack.c.l.b16 %v454
      %v496 = vpack.c.b16 %v481, %v480
      %v497 = vpack.c.b16 %v483, %v482
      %v498 = vpack.c.b16 %v485, %v484
      %v499 = vpack.c.b16 %v487, %v486
      %v500 = vpack.c.b16 %v489, %v488
      %v501 = vpack.c.b16 %v491, %v490
      %v502 = vpack.c.b16 %v493, %v492
      %v503 = vpack.c.b16 %v495, %v494
      %512 = vmatprep.subr.bf16.mxu0 0
      %513 = vmatpush1.bf16.msra.mxu0 %v496
      %514 = vmatprep.subr.bf16.mxu0 0
      %515 = vmatpush1.bf16.msra.mxu0 %v497
      %516 = vmatprep.subr.bf16.mxu0 0
      %517 = vmatpush1.bf16.msra.mxu0 %v498
      %518 = vmatprep.subr.bf16.mxu0 0
      %519 = vmatpush1.bf16.msra.mxu0 %v499
      %520 = vmatprep.subr.bf16.mxu0 0
      %521 = vmatpush1.bf16.msra.mxu0 %v500
      %522 = vmatprep.subr.bf16.mxu0 0
      %523 = vmatpush1.bf16.msra.mxu0 %v501
      %524 = vmatprep.subr.bf16.mxu0 0
      %525 = vmatpush1.bf16.msra.mxu0 %v502
      %526 = vmatprep.subr.bf16.mxu0 0
      %527 = vmatpush1.bf16.msra.mxu0 %v503
      %528 = vmatprep.subr.bf16.mxu0 0
      %529 = vmatpush1.bf16.msra.mxu0 0
      %530 = vmatprep.subr.bf16.mxu0 0
      %531 = vmatpush1.bf16.msra.mxu0 0
      %532 = vmatprep.subr.bf16.mxu0 0
      %533 = vmatpush1.bf16.msra.mxu0 0
      %534 = vmatprep.subr.bf16.mxu0 0
      %535 = vmatpush1.bf16.msra.mxu0 0
      %536 = vmatprep.subr.bf16.mxu0 0
      %537 = vmatpush1.bf16.msra.mxu0 0
      %538 = vmatprep.subr.bf16.mxu0 0
      %539 = vmatpush1.bf16.msra.mxu0 0
      %540 = vmatprep.subr.bf16.mxu0 0
      %541 = vmatpush1.bf16.msra.mxu0 0
      %542 = vmatprep.subr.bf16.mxu0 0
      %543 = vmatpush1.bf16.msra.mxu0 0
      %544 = vmatprep.mubr.bf16.mxu0 0
      %545 = vmatmul.mubr.bf16.gmra.mrb[0].mxu0 %v456
      %v546 = vpop.f32.mrb[0].mxu0
      %v547 = vadd.f32 %v462, %v546
      %v548 = vpop.f32.mrb[0].mxu0
      %v549 = vpop.f32.mrb[0].mxu0
      %v550 = vadd.f32 %v462, %v549
      %v551 = vpop.f32.mrb[0].mxu0
      %552 = vmatprep.mubr.bf16.mxu0 0
      %553 = vmatmul.mubr.bf16.gmra.mrb[0].mxu0 %v457
      %v554 = vpop.f32.mrb[0].mxu0
      %v555 = vadd.f32 %v462, %v554
      %v556 = vpop.f32.mrb[0].mxu0
      %v557 = vpop.f32.mrb[0].mxu0
      %v558 = vadd.f32 %v462, %v557
      %v559 = vpop.f32.mrb[0].mxu0
      %560 = vdwg.mxu0
      %v561 = vmul.f32 %v547, 0.5
      %v562 = vmul.f32 %v550, 0.5
      %v563 = vmul.f32 %v555, 0.5
      %v564 = vmul.f32 %v558, 0.5
      %v565 = vmul.f32 %v547, 0.70710677
      %v566 = vmul.f32 %v550, 0.70710677
      %v567 = vmul.f32 %v555, 0.70710677
      %v568 = vmul.f32 %v558, 0.70710677
      %v569 = verf.f32.pop %v565
      %v570 = verf.f32.pop %v566
      %v571 = verf.f32.pop %v567
      %v572 = verf.f32.pop %v568
      %v573 = vadd.f32 %v569, 1.0
      %v574 = vadd.f32 %v570, 1.0
      %v575 = vadd.f32 %v571, 1.0
      %v576 = vadd.f32 %v572, 1.0
      %v577 = vmul.f32 %v561, %v573
      %v578 = vmul.f32 %v562, %v574
      %v579 = vmul.f32 %v563, %v575
      %v580 = vmul.f32 %v564, %v576
      %v581 = vld [vmem:[%s5] sm:$0xf]
      %v582 = vld [vmem:[%s5 + $0x4] sm:$0xf]
      %v583 = vld [vmem:[%s5 + $0x8] sm:$0xf]
      %v584 = vld [vmem:[%s5 + $0xc] sm:$0xf]
      %v585 = vld [vmem:[%s5 + $0x10] sm:$0xf]
      %v586 = vld [vmem:[%s5 + $0x14] sm:$0xf]
      %v587 = vld [vmem:[%s5 + $0x18] sm:$0xf]
      %v588 = vld [vmem:[%s5 + $0x1c] sm:$0xf]
      %v589 = vld [vmem:[%s5 + $0x20] sm:$0xf]
      %v590 = vld [vmem:[%s5 + $0x24] sm:$0xf]
      %v591 = vld [vmem:[%s5 + $0x28] sm:$0xf]
      %v592 = vld [vmem:[%s5 + $0x2c] sm:$0xf]
      %v593 = vld [vmem:[%s5 + $0x30] sm:$0xf]
      %v594 = vld [vmem:[%s5 + $0x34] sm:$0xf]
      %v595 = vld [vmem:[%s5 + $0x38] sm:$0xf]
      %v596 = vld [vmem:[%s5 + $0x3c] sm:$0xf]
      %v597 = vld [vmem:[%s6] sm:$0x1]
      %v598 = vpack.c.bf16 %v578, %v577
      %v599 = vpack.c.bf16 %v580, %v579
      %v601 = vlaneseq
      %v602 = vshrl.u32 %v601, 7
      %v603 = vsub.s32 0, %v602
      %v604 = vrot.slane %v597, %v603
      %v622 = vunpack.c.l.b16 %v581
      %v623 = vunpack.c.l.b16 %v582
      %v624 = vunpack.c.l.b16 %v583
      %v625 = vunpack.c.l.b16 %v584
      %v626 = vunpack.c.l.b16 %v585
      %v627 = vunpack.c.l.b16 %v586
      %v628 = vunpack.c.l.b16 %v587
      %v629 = vunpack.c.l.b16 %v588
      %v630 = vunpack.c.l.b16 %v589
      %v631 = vunpack.c.l.b16 %v590
      %v632 = vunpack.c.l.b16 %v591
      %v633 = vunpack.c.l.b16 %v592
      %v634 = vunpack.c.l.b16 %v593
      %v635 = vunpack.c.l.b16 %v594
      %v636 = vunpack.c.l.b16 %v595
      %v637 = vunpack.c.l.b16 %v596
      %v638 = vpack.c.b16 %v623, %v622
      %v639 = vpack.c.b16 %v625, %v624
      %v640 = vpack.c.b16 %v627, %v626
      %v641 = vpack.c.b16 %v629, %v628
      %v642 = vpack.c.b16 %v631, %v630
      %v643 = vpack.c.b16 %v633, %v632
      %v644 = vpack.c.b16 %v635, %v634
      %v645 = vpack.c.b16 %v637, %v636
      %654 = vmatprep.subr.bf16.mxu0 0
      %655 = vmatpush1.bf16.msra.mxu0 %v638
      %656 = vmatprep.subr.bf16.mxu0 0
      %657 = vmatpush1.bf16.msra.mxu0 %v639
      %658 = vmatprep.subr.bf16.mxu0 0
      %659 = vmatpush1.bf16.msra.mxu0 %v640
      %660 = vmatprep.subr.bf16.mxu0 0
      %661 = vmatpush1.bf16.msra.mxu0 %v641
      %662 = vmatprep.subr.bf16.mxu0 0
      %663 = vmatpush1.bf16.msra.mxu0 %v642
      %664 = vmatprep.subr.bf16.mxu0 0
      %665 = vmatpush1.bf16.msra.mxu0 %v643
      %666 = vmatprep.subr.bf16.mxu0 0
      %667 = vmatpush1.bf16.msra.mxu0 %v644
      %668 = vmatprep.subr.bf16.mxu0 0
      %669 = vmatpush1.bf16.msra.mxu0 %v645
      %670 = vmatprep.subr.bf16.mxu0 0
      %671 = vmatpush1.bf16.msra.mxu0 0
      %672 = vmatprep.subr.bf16.mxu0 0
      %673 = vmatpush1.bf16.msra.mxu0 0
      %674 = vmatprep.subr.bf16.mxu0 0
      %675 = vmatpush1.bf16.msra.mxu0 0
      %676 = vmatprep.subr.bf16.mxu0 0
      %677 = vmatpush1.bf16.msra.mxu0 0
      %678 = vmatprep.subr.bf16.mxu0 0
      %679 = vmatpush1.bf16.msra.mxu0 0
      %680 = vmatprep.subr.bf16.mxu0 0
      %681 = vmatpush1.bf16.msra.mxu0 0
      %682 = vmatprep.subr.bf16.mxu0 0
      %683 = vmatpush1.bf16.msra.mxu0 0
      %684 = vmatprep.subr.bf16.mxu0 0
      %685 = vmatpush1.bf16.msra.mxu0 0
      %686 = vmatprep.mubr.bf16.mxu0 0
      %687 = vmatmul.mubr.bf16.gmra.mrb[0].mxu0 %v598
      %v688 = vpop.f32.mrb[0].mxu0
      %v689 = vadd.f32 %v604, %v688
      %v690 = vpop.f32.mrb[0].mxu0
      %v691 = vpop.f32.mrb[0].mxu0
      %v692 = vadd.f32 %v604, %v691
      %v693 = vpop.f32.mrb[0].mxu0
      %694 = vmatprep.mubr.bf16.mxu0 0
      %695 = vmatmul.mubr.bf16.gmra.mrb[0].mxu0 %v599
      %v696 = vpop.f32.mrb[0].mxu0
      %v697 = vadd.f32 %v604, %v696
      %v698 = vpop.f32.mrb[0].mxu0
      %v699 = vpop.f32.mrb[0].mxu0
      %v700 = vadd.f32 %v604, %v699
      %v701 = vpop.f32.mrb[0].mxu0
      %702 = vdwg.mxu0
      %v703 = vmul.f32 %v689, 0.5
      %v704 = vmul.f32 %v692, 0.5
      %v705 = vmul.f32 %v697, 0.5
      %v706 = vmul.f32 %v700, 0.5
      %v707 = vmul.f32 %v689, 0.70710677
      %v708 = vmul.f32 %v692, 0.70710677
      %v709 = vmul.f32 %v697, 0.70710677
      %v710 = vmul.f32 %v700, 0.70710677
      %v711 = verf.f32.pop %v707
      %v712 = verf.f32.pop %v708
      %v713 = verf.f32.pop %v709
      %v714 = verf.f32.pop %v710
      %v715 = vadd.f32 %v711, 1.0
      %v716 = vadd.f32 %v712, 1.0
      %v717 = vadd.f32 %v713, 1.0
      %v718 = vadd.f32 %v714, 1.0
      %v719 = vmul.f32 %v703, %v715
      %v720 = vmul.f32 %v704, %v716
      %v721 = vmul.f32 %v705, %v717
      %v722 = vmul.f32 %v706, %v718
      %723 = vst [vmem:[%s280] sm:$0xff] %v719
      %724 = vst [vmem:[%s280 + $0x8] sm:$0xff] %v720
      %725 = vst [vmem:[%s280 + $0x10] sm:$0xff] %v721
      %726 = vst [vmem:[%s280 + $0x18] sm:$0xff] %v722
      %s727 = smul.u32 4, %s18
      %p728 = scmp.lt.s32.totalorder %s727, 7
      %s729 = scalar_select %p728, %s727, 7
      %s730 = smul.addr %s729, 8
      %s731 = scalar_lea.vmem %s7, %s730
      // Predicated region
      $region49: #{fused_fc_block.1} parent=47 // pred_check
        %p732 = pneg %p188
      $region50: #{fused_fc_block.1} parent=47 // pred_check_branch
        %734 = sbr.rel (%p732) target = $region52
      $region51: #{fused_fc_block.1} parent=47 // pred_region
        %s735 = smul.u32 4, %s18
      $region52: #{fused_fc_block.1} parent=47 // pred_fallthru
        _
    $region48: #{fused_fc_block.1} parent=5 // pred_fallthru
      _
    %p736 = scmp.le.s32.totalorder 2, %s13
    // Predicated region
    $region53: #{fused_fc_block.1} parent=5 // pred_check
      %p737 = pneg %p736
    $region54: #{fused_fc_block.1} parent=5 // pred_check_branch
      %739 = sbr.rel (%p737) target = $region56
    $region55: #{fused_fc_block.1} parent=5 // pred_region
      %s740 = ssub.s32 %s13, 2
      // Predicated region
      $region57: #{fused_fc_block.1} parent=55 // pred_check
        %p741 = pneg %p194
      $region58: #{fused_fc_block.1} parent=55 // pred_check_branch
        %743 = sbr.rel (%p741) target = $region60
      $region59: #{fused_fc_block.1} parent=55 // pred_region
        %s744 = smul.u32 4, %s19
        %p745 = scmp.lt.s32.totalorder %s744, 7
        %s746 = scalar_select %p745, %s744, 7
        %s747 = smul.addr %s746, 8
        %s748 = scalar_lea.vmem %s7, %s747
      $region60: #{fused_fc_block.1} parent=55 // pred_fallthru
        _
    $region56: #{fused_fc_block.1} parent=5 // pred_fallthru
      _
  $region6: #{fused_fc_block.1} parent=0 // loop_footer
    %s17 = sadd.s32 1, %s13
  $region7: #{fused_fc_block.1} parent=0 // loop_footer_branch
    %12 = sbr.rel target = $region3
  $region8: #{fused_fc_block.1} parent=0 // loop_exit
    _

</llo_original>
